<compile_context>
chip_gen: v6e
topology: v6e:2x2x1
jax: 0.10.0
libtpu: 0.0.40
codegen_flags: <defaults>
</compile_context>

<pallas_src>
import jax
import jax.numpy as jnp
from jax.experimental import pallas as pl
from jax.experimental.pallas import tpu as pltpu

STATE_DIM = 16
ACTION_DIM = 4
HIDDEN = 512
BN_EPS = 1e-5

# Packed f32 vector-block layout (rows of a (VEC_ROWS, HIDDEN) array):
#   0: b_s   1: g_s   2: bt_s
#   3: b1    4: g1    5: bt1
#   6: b2    7: g2    8: bt2
#   9: w3 row (fc3 weight, transposed to a (HIDDEN,) row)
#   10 .. 10+ACTION_DIM-1: rows of W1b (action branch of fc1)
#   B3_ROW, col 0: b3 scalar
B3_ROW = 10 + ACTION_DIM
VEC_ROWS = ((B3_ROW + 1 + 7) // 8) * 8   # pad row count to a multiple of 8


def _bn_relu(h, gamma, beta):
    # Folded BatchNorm1d (training mode: batch stats, biased var) + ReLU.
    mean = jnp.mean(h, axis=0, keepdims=True)
    mean_sq = jnp.mean(h * h, axis=0, keepdims=True)
    var = jnp.maximum(mean_sq - mean * mean, 0.0)
    scale = gamma * jax.lax.rsqrt(var + BN_EPS)
    shift = beta - mean * scale
    return jnp.maximum(h * scale + shift, 0.0)


def critic_kernel(state_ref, action_ref, ws_ref, w1a_ref, w2_ref, vec_ref,
                  out_ref):
    vec = vec_ref[...]                              # (VEC_ROWS, HIDDEN) f32
    b_s, g_s, bt_s = vec[0:1], vec[1:2], vec[2:3]
    b1, g1, bt1 = vec[3:4], vec[4:5], vec[5:6]
    b2, g2, bt2 = vec[6:7], vec[7:8], vec[8:9]
    w3_row = vec[9:10]                              # (1, HIDDEN)
    w1b = vec[10:10 + ACTION_DIM]                   # (ACTION_DIM, HIDDEN)
    b3 = vec[B3_ROW:B3_ROW + 1, 0:1]                # (1, 1)

    state = state_ref[...]                          # (B, STATE_DIM) f32
    action = action_ref[...]                        # (B, ACTION_DIM) f32

    # --- fc_state (bf16 MXU, f32 acc) -> bn_state -> relu -------------------
    h = jnp.dot(state.astype(jnp.bfloat16), ws_ref[...],
                preferred_element_type=jnp.float32) + b_s
    h = _bn_relu(h, g_s, bt_s)

    # --- fc1: cat([h, action]) @ W1 == h @ W1a (MXU) + action @ W1b (VPU) ---
    x = jnp.dot(h.astype(jnp.bfloat16), w1a_ref[...],
                preferred_element_type=jnp.float32) + b1
    for k in range(ACTION_DIM):                     # 4 rank-1 VPU FMAs
        x = x + action[:, k:k + 1] * w1b[k:k + 1, :]
    x = _bn_relu(x, g1, bt1)

    # --- fc2 (bf16 MXU, f32 acc) -> bn2 -> relu ------------------------------
    x = jnp.dot(x.astype(jnp.bfloat16), w2_ref[...],
                preferred_element_type=jnp.float32) + b2
    x = _bn_relu(x, g2, bt2)

    # --- fc3 as VPU multiply + lane reduction (N=1 matmul kept off the MXU) --
    out_ref[...] = jnp.sum(x * w3_row, axis=-1, keepdims=True) + b3


def critic_forward(state, action, ws, w1a, w2, vec):
    B = state.shape[0]
    vmem = pl.BlockSpec(memory_space=pltpu.MemorySpace.VMEM)
    return pl.pallas_call(
        critic_kernel,
        out_shape=jax.ShapeDtypeStruct((B, 1), jnp.float32),
        in_specs=[vmem] * 6,
        out_specs=vmem,
        compiler_params=pltpu.CompilerParams(vmem_limit_bytes=8 * 1024 * 1024),
    )(state, action, ws, w1a, w2, vec)


def init_params(key):
    ks = jax.random.split(key, 9)
    p = {}
    # Linear weights stored as (in, out) == W^T of the PyTorch layout.
    p["w_s"] = jax.random.normal(ks[0], (STATE_DIM, HIDDEN), jnp.float32) * 0.05
    p["b_s"] = jax.random.normal(ks[1], (HIDDEN,), jnp.float32) * 0.05
    p["g_s"] = jnp.ones((HIDDEN,), jnp.float32)
    p["bt_s"] = jnp.zeros((HIDDEN,), jnp.float32)

    p["w1a"] = jax.random.normal(ks[2], (HIDDEN, HIDDEN), jnp.float32) * 0.05
    p["w1b"] = jax.random.normal(ks[3], (ACTION_DIM, HIDDEN), jnp.float32) * 0.05
    p["b1"] = jax.random.normal(ks[4], (HIDDEN,), jnp.float32) * 0.05
    p["g1"] = jnp.ones((HIDDEN,), jnp.float32)
    p["bt1"] = jnp.zeros((HIDDEN,), jnp.float32)

    p["w2"] = jax.random.normal(ks[5], (HIDDEN, HIDDEN), jnp.float32) * 0.05
    p["b2"] = jax.random.normal(ks[6], (HIDDEN,), jnp.float32) * 0.05
    p["g2"] = jnp.ones((HIDDEN,), jnp.float32)
    p["bt2"] = jnp.zeros((HIDDEN,), jnp.float32)

    p["w3"] = jax.random.normal(ks[7], (HIDDEN,), jnp.float32) * 0.05
    p["b3"] = jax.random.normal(ks[8], (), jnp.float32) * 0.05
    return p


def pack_params(p):
    """Pack params into the 4 kernel weight operands."""
    ws = p["w_s"].astype(jnp.bfloat16)               # (STATE_DIM, HIDDEN) bf16
    w1a = p["w1a"].astype(jnp.bfloat16)              # (HIDDEN, HIDDEN)   bf16
    w2 = p["w2"].astype(jnp.bfloat16)                # (HIDDEN, HIDDEN)   bf16
    vec = jnp.zeros((VEC_ROWS, HIDDEN), jnp.float32)
    rows = jnp.stack([p["b_s"], p["g_s"], p["bt_s"],
                      p["b1"], p["g1"], p["bt1"],
                      p["b2"], p["g2"], p["bt2"],
                      p["w3"]])
    vec = vec.at[0:10].set(rows)
    vec = vec.at[10:10 + ACTION_DIM].set(p["w1b"])
    vec = vec.at[B3_ROW, 0].set(p["b3"])
    return ws, w1a, w2, vec


def critic_reference(state, action, p):
    # Pure-JAX reference mirroring the PyTorch forward (training-mode BN).
    # Uses the same bf16-quantized weight values (upcast to f32) as the kernel.
    w_s = p["w_s"].astype(jnp.bfloat16).astype(jnp.float32)
    w1a = p["w1a"].astype(jnp.bfloat16).astype(jnp.float32)
    w2 = p["w2"].astype(jnp.bfloat16).astype(jnp.float32)

    def bn_relu(h, g, b):
        m = jnp.mean(h, axis=0, keepdims=True)
        v = jnp.mean((h - m) ** 2, axis=0, keepdims=True)
        return jnp.maximum((h - m) / jnp.sqrt(v + BN_EPS) * g + b, 0.0)

    h = state @ w_s + p["b_s"]
    h = bn_relu(h, p["g_s"], p["bt_s"])
    x = jnp.concatenate([h, action], axis=1)
    w1 = jnp.concatenate([w1a, p["w1b"]], axis=0)
    x = x @ w1 + p["b1"]
    x = bn_relu(x, p["g1"], p["bt1"])
    x = x @ w2 + p["b2"]
    x = bn_relu(x, p["g2"], p["bt2"])
    return x @ p["w3"][:, None] + p["b3"]


# TODO(synk): BatchNorm eval mode (running statistics) is not implemented; the
# kernel matches the freshly-constructed (training-mode) PyTorch module only.

if __name__ == "__main__":
    key = jax.random.PRNGKey(0)
    k_param, k_state, k_action = jax.random.split(key, 3)

    B = 8
    state = jax.random.normal(k_state, (B, STATE_DIM), jnp.float32)
    action = jax.random.normal(k_action, (B, ACTION_DIM), jnp.float32)
    params = init_params(k_param)
    ws, w1a, w2, vec = pack_params(params)

    q = critic_forward(state, action, ws, w1a, w2, vec)
    q = jax.block_until_ready(q)

    q_ref = critic_reference(state, action, params)
    assert q.shape == (B, 1)
    # bf16 weight storage + bf16 MXU inputs (f32 accumulation) => looser tol.
    assert jnp.allclose(q, q_ref, atol=2e-2, rtol=2e-2), (q, q_ref)

    print("KERNEL_OK")
</pallas_src>

<mosaic_0001>
module attributes {stable_mosaic.version = 11 : i64} {
  func.func @critic_kernel(%arg0: memref<8x16xf32, #tpu.memory_space<vmem>>, %arg1: memref<8x4xf32, #tpu.memory_space<vmem>>, %arg2: memref<16x512xbf16, #tpu.memory_space<vmem>>, %arg3: memref<512x512xbf16, #tpu.memory_space<vmem>>, %arg4: memref<512x512xbf16, #tpu.memory_space<vmem>>, %arg5: memref<16x512xf32, #tpu.memory_space<vmem>>, %arg6: memref<8x1xf32, #tpu.memory_space<vmem>>) attributes {dimension_semantics = [], scalar_prefetch = 0 : i64, scratch_operands = 0 : i64, tpu.core_type = #tpu.core_type<tc>} {
    %c0 = arith.constant 0 : index
    %c0_0 = arith.constant 0 : index
    %0 = vector.load %arg5[%c0, %c0_0] : memref<16x512xf32, #tpu.memory_space<vmem>>, vector<16x512xf32>
    %1 = vector.extract_strided_slice %0 {offsets = [0, 0], sizes = [1, 512], strides = [1, 1]} : vector<16x512xf32> to vector<1x512xf32>
    %2 = vector.extract_strided_slice %0 {offsets = [1, 0], sizes = [1, 512], strides = [1, 1]} : vector<16x512xf32> to vector<1x512xf32>
    %3 = vector.extract_strided_slice %0 {offsets = [2, 0], sizes = [1, 512], strides = [1, 1]} : vector<16x512xf32> to vector<1x512xf32>
    %4 = vector.extract_strided_slice %0 {offsets = [3, 0], sizes = [1, 512], strides = [1, 1]} : vector<16x512xf32> to vector<1x512xf32>
    %5 = vector.extract_strided_slice %0 {offsets = [4, 0], sizes = [1, 512], strides = [1, 1]} : vector<16x512xf32> to vector<1x512xf32>
    %6 = vector.extract_strided_slice %0 {offsets = [5, 0], sizes = [1, 512], strides = [1, 1]} : vector<16x512xf32> to vector<1x512xf32>
    %7 = vector.extract_strided_slice %0 {offsets = [6, 0], sizes = [1, 512], strides = [1, 1]} : vector<16x512xf32> to vector<1x512xf32>
    %8 = vector.extract_strided_slice %0 {offsets = [7, 0], sizes = [1, 512], strides = [1, 1]} : vector<16x512xf32> to vector<1x512xf32>
    %9 = vector.extract_strided_slice %0 {offsets = [8, 0], sizes = [1, 512], strides = [1, 1]} : vector<16x512xf32> to vector<1x512xf32>
    %10 = vector.extract_strided_slice %0 {offsets = [9, 0], sizes = [1, 512], strides = [1, 1]} : vector<16x512xf32> to vector<1x512xf32>
    %11 = vector.extract_strided_slice %0 {offsets = [10, 0], sizes = [4, 512], strides = [1, 1]} : vector<16x512xf32> to vector<4x512xf32>
    %12 = vector.extract_strided_slice %0 {offsets = [14, 0], sizes = [1, 1], strides = [1, 1]} : vector<16x512xf32> to vector<1x1xf32>
    %c0_1 = arith.constant 0 : index
    %c0_2 = arith.constant 0 : index
    %13 = vector.load %arg0[%c0_1, %c0_2] : memref<8x16xf32, #tpu.memory_space<vmem>>, vector<8x16xf32>
    %c0_3 = arith.constant 0 : index
    %c0_4 = arith.constant 0 : index
    %14 = vector.load %arg1[%c0_3, %c0_4] : memref<8x4xf32, #tpu.memory_space<vmem>>, vector<8x4xf32>
    %15 = arith.truncf %13 : vector<8x16xf32> to vector<8x16xbf16>
    %c0_5 = arith.constant 0 : index
    %c0_6 = arith.constant 0 : index
    %16 = vector.load %arg2[%c0_5, %c0_6] : memref<16x512xbf16, #tpu.memory_space<vmem>>, vector<16x512xbf16>
    %cst = arith.constant dense<0.000000e+00> : vector<8x512xf32>
    %17 = tpu.matmul %15, %16, %cst {dimension_numbers = #tpu.dot_dimension_numbers<[1], [0], [0], [1], [0, 0, 1, 1], [], []>} : vector<8x16xbf16>, vector<16x512xbf16>, vector<8x512xf32> -> vector<8x512xf32>
    %18 = vector.broadcast %1 : vector<1x512xf32> to vector<8x512xf32>
    %19 = arith.addf %17, %18 : vector<8x512xf32>
    %cst_7 = arith.constant dense<0.000000e+00> : vector<512xf32>
    %20 = vector.multi_reduction <add>, %19, %cst_7 [0] : vector<8x512xf32> to vector<512xf32>
    %21 = vector.shape_cast %20 : vector<512xf32> to vector<1x512xf32>
    %cst_8 = arith.constant 8.000000e+00 : f32
    %22 = vector.broadcast %cst_8 : f32 to vector<1x512xf32>
    %23 = arith.divf %21, %22 : vector<1x512xf32>
    %24 = arith.mulf %19, %19 : vector<8x512xf32>
    %cst_9 = arith.constant dense<0.000000e+00> : vector<512xf32>
    %25 = vector.multi_reduction <add>, %24, %cst_9 [0] : vector<8x512xf32> to vector<512xf32>
    %26 = vector.shape_cast %25 : vector<512xf32> to vector<1x512xf32>
    %cst_10 = arith.constant 8.000000e+00 : f32
    %27 = vector.broadcast %cst_10 : f32 to vector<1x512xf32>
    %28 = arith.divf %26, %27 : vector<1x512xf32>
    %29 = arith.mulf %23, %23 : vector<1x512xf32>
    %30 = arith.subf %28, %29 : vector<1x512xf32>
    %cst_11 = arith.constant 0.000000e+00 : f32
    %31 = vector.broadcast %cst_11 : f32 to vector<1x512xf32>
    %32 = arith.maximumf %30, %31 : vector<1x512xf32>
    %cst_12 = arith.constant 9.99999974E-6 : f32
    %33 = vector.broadcast %cst_12 : f32 to vector<1x512xf32>
    %34 = arith.addf %32, %33 : vector<1x512xf32>
    %35 = math.rsqrt %34 : vector<1x512xf32>
    %36 = arith.mulf %2, %35 : vector<1x512xf32>
    %37 = arith.mulf %23, %36 : vector<1x512xf32>
    %38 = arith.subf %3, %37 : vector<1x512xf32>
    %39 = vector.broadcast %36 : vector<1x512xf32> to vector<8x512xf32>
    %40 = arith.mulf %19, %39 : vector<8x512xf32>
    %41 = vector.broadcast %38 : vector<1x512xf32> to vector<8x512xf32>
    %42 = arith.addf %40, %41 : vector<8x512xf32>
    %cst_13 = arith.constant 0.000000e+00 : f32
    %43 = vector.broadcast %cst_13 : f32 to vector<8x512xf32>
    %44 = arith.maximumf %42, %43 : vector<8x512xf32>
    %45 = arith.truncf %44 : vector<8x512xf32> to vector<8x512xbf16>
    %c0_14 = arith.constant 0 : index
    %c0_15 = arith.constant 0 : index
    %46 = vector.load %arg3[%c0_14, %c0_15] : memref<512x512xbf16, #tpu.memory_space<vmem>>, vector<512x512xbf16>
    %cst_16 = arith.constant dense<0.000000e+00> : vector<8x512xf32>
    %47 = tpu.matmul %45, %46, %cst_16 {dimension_numbers = #tpu.dot_dimension_numbers<[1], [0], [0], [1], [0, 0, 1, 1], [], []>} : vector<8x512xbf16>, vector<512x512xbf16>, vector<8x512xf32> -> vector<8x512xf32>
    %48 = vector.broadcast %4 : vector<1x512xf32> to vector<8x512xf32>
    %49 = arith.addf %47, %48 : vector<8x512xf32>
    %50 = vector.extract_strided_slice %14 {offsets = [0, 0], sizes = [8, 1], strides = [1, 1]} : vector<8x4xf32> to vector<8x1xf32>
    %51 = vector.extract_strided_slice %11 {offsets = [0, 0], sizes = [1, 512], strides = [1, 1]} : vector<4x512xf32> to vector<1x512xf32>
    %52 = vector.broadcast %50 : vector<8x1xf32> to vector<8x512xf32>
    %53 = vector.broadcast %51 : vector<1x512xf32> to vector<8x512xf32>
    %54 = arith.mulf %52, %53 : vector<8x512xf32>
    %55 = arith.addf %49, %54 : vector<8x512xf32>
    %56 = vector.extract_strided_slice %14 {offsets = [0, 1], sizes = [8, 1], strides = [1, 1]} : vector<8x4xf32> to vector<8x1xf32>
    %57 = vector.extract_strided_slice %11 {offsets = [1, 0], sizes = [1, 512], strides = [1, 1]} : vector<4x512xf32> to vector<1x512xf32>
    %58 = vector.broadcast %56 : vector<8x1xf32> to vector<8x512xf32>
    %59 = vector.broadcast %57 : vector<1x512xf32> to vector<8x512xf32>
    %60 = arith.mulf %58, %59 : vector<8x512xf32>
    %61 = arith.addf %55, %60 : vector<8x512xf32>
    %62 = vector.extract_strided_slice %14 {offsets = [0, 2], sizes = [8, 1], strides = [1, 1]} : vector<8x4xf32> to vector<8x1xf32>
    %63 = vector.extract_strided_slice %11 {offsets = [2, 0], sizes = [1, 512], strides = [1, 1]} : vector<4x512xf32> to vector<1x512xf32>
    %64 = vector.broadcast %62 : vector<8x1xf32> to vector<8x512xf32>
    %65 = vector.broadcast %63 : vector<1x512xf32> to vector<8x512xf32>
    %66 = arith.mulf %64, %65 : vector<8x512xf32>
    %67 = arith.addf %61, %66 : vector<8x512xf32>
    %68 = vector.extract_strided_slice %14 {offsets = [0, 3], sizes = [8, 1], strides = [1, 1]} : vector<8x4xf32> to vector<8x1xf32>
    %69 = vector.extract_strided_slice %11 {offsets = [3, 0], sizes = [1, 512], strides = [1, 1]} : vector<4x512xf32> to vector<1x512xf32>
    %70 = vector.broadcast %68 : vector<8x1xf32> to vector<8x512xf32>
    %71 = vector.broadcast %69 : vector<1x512xf32> to vector<8x512xf32>
    %72 = arith.mulf %70, %71 : vector<8x512xf32>
    %73 = arith.addf %67, %72 : vector<8x512xf32>
    %cst_17 = arith.constant dense<0.000000e+00> : vector<512xf32>
    %74 = vector.multi_reduction <add>, %73, %cst_17 [0] : vector<8x512xf32> to vector<512xf32>
    %75 = vector.shape_cast %74 : vector<512xf32> to vector<1x512xf32>
    %cst_18 = arith.constant 8.000000e+00 : f32
    %76 = vector.broadcast %cst_18 : f32 to vector<1x512xf32>
    %77 = arith.divf %75, %76 : vector<1x512xf32>
    %78 = arith.mulf %73, %73 : vector<8x512xf32>
    %cst_19 = arith.constant dense<0.000000e+00> : vector<512xf32>
    %79 = vector.multi_reduction <add>, %78, %cst_19 [0] : vector<8x512xf32> to vector<512xf32>
    %80 = vector.shape_cast %79 : vector<512xf32> to vector<1x512xf32>
    %cst_20 = arith.constant 8.000000e+00 : f32
    %81 = vector.broadcast %cst_20 : f32 to vector<1x512xf32>
    %82 = arith.divf %80, %81 : vector<1x512xf32>
    %83 = arith.mulf %77, %77 : vector<1x512xf32>
    %84 = arith.subf %82, %83 : vector<1x512xf32>
    %cst_21 = arith.constant 0.000000e+00 : f32
    %85 = vector.broadcast %cst_21 : f32 to vector<1x512xf32>
    %86 = arith.maximumf %84, %85 : vector<1x512xf32>
    %cst_22 = arith.constant 9.99999974E-6 : f32
    %87 = vector.broadcast %cst_22 : f32 to vector<1x512xf32>
    %88 = arith.addf %86, %87 : vector<1x512xf32>
    %89 = math.rsqrt %88 : vector<1x512xf32>
    %90 = arith.mulf %5, %89 : vector<1x512xf32>
    %91 = arith.mulf %77, %90 : vector<1x512xf32>
    %92 = arith.subf %6, %91 : vector<1x512xf32>
    %93 = vector.broadcast %90 : vector<1x512xf32> to vector<8x512xf32>
    %94 = arith.mulf %73, %93 : vector<8x512xf32>
    %95 = vector.broadcast %92 : vector<1x512xf32> to vector<8x512xf32>
    %96 = arith.addf %94, %95 : vector<8x512xf32>
    %cst_23 = arith.constant 0.000000e+00 : f32
    %97 = vector.broadcast %cst_23 : f32 to vector<8x512xf32>
    %98 = arith.maximumf %96, %97 : vector<8x512xf32>
    %99 = arith.truncf %98 : vector<8x512xf32> to vector<8x512xbf16>
    %c0_24 = arith.constant 0 : index
    %c0_25 = arith.constant 0 : index
    %100 = vector.load %arg4[%c0_24, %c0_25] : memref<512x512xbf16, #tpu.memory_space<vmem>>, vector<512x512xbf16>
    %cst_26 = arith.constant dense<0.000000e+00> : vector<8x512xf32>
    %101 = tpu.matmul %99, %100, %cst_26 {dimension_numbers = #tpu.dot_dimension_numbers<[1], [0], [0], [1], [0, 0, 1, 1], [], []>} : vector<8x512xbf16>, vector<512x512xbf16>, vector<8x512xf32> -> vector<8x512xf32>
    %102 = vector.broadcast %7 : vector<1x512xf32> to vector<8x512xf32>
    %103 = arith.addf %101, %102 : vector<8x512xf32>
    %cst_27 = arith.constant dense<0.000000e+00> : vector<512xf32>
    %104 = vector.multi_reduction <add>, %103, %cst_27 [0] : vector<8x512xf32> to vector<512xf32>
    %105 = vector.shape_cast %104 : vector<512xf32> to vector<1x512xf32>
    %cst_28 = arith.constant 8.000000e+00 : f32
    %106 = vector.broadcast %cst_28 : f32 to vector<1x512xf32>
    %107 = arith.divf %105, %106 : vector<1x512xf32>
    %108 = arith.mulf %103, %103 : vector<8x512xf32>
    %cst_29 = arith.constant dense<0.000000e+00> : vector<512xf32>
    %109 = vector.multi_reduction <add>, %108, %cst_29 [0] : vector<8x512xf32> to vector<512xf32>
    %110 = vector.shape_cast %109 : vector<512xf32> to vector<1x512xf32>
    %cst_30 = arith.constant 8.000000e+00 : f32
    %111 = vector.broadcast %cst_30 : f32 to vector<1x512xf32>
    %112 = arith.divf %110, %111 : vector<1x512xf32>
    %113 = arith.mulf %107, %107 : vector<1x512xf32>
    %114 = arith.subf %112, %113 : vector<1x512xf32>
    %cst_31 = arith.constant 0.000000e+00 : f32
    %115 = vector.broadcast %cst_31 : f32 to vector<1x512xf32>
    %116 = arith.maximumf %114, %115 : vector<1x512xf32>
    %cst_32 = arith.constant 9.99999974E-6 : f32
    %117 = vector.broadcast %cst_32 : f32 to vector<1x512xf32>
    %118 = arith.addf %116, %117 : vector<1x512xf32>
    %119 = math.rsqrt %118 : vector<1x512xf32>
    %120 = arith.mulf %8, %119 : vector<1x512xf32>
    %121 = arith.mulf %107, %120 : vector<1x512xf32>
    %122 = arith.subf %9, %121 : vector<1x512xf32>
    %123 = vector.broadcast %120 : vector<1x512xf32> to vector<8x512xf32>
    %124 = arith.mulf %103, %123 : vector<8x512xf32>
    %125 = vector.broadcast %122 : vector<1x512xf32> to vector<8x512xf32>
    %126 = arith.addf %124, %125 : vector<8x512xf32>
    %cst_33 = arith.constant 0.000000e+00 : f32
    %127 = vector.broadcast %cst_33 : f32 to vector<8x512xf32>
    %128 = arith.maximumf %126, %127 : vector<8x512xf32>
    %129 = vector.broadcast %10 : vector<1x512xf32> to vector<8x512xf32>
    %130 = arith.mulf %128, %129 : vector<8x512xf32>
    %cst_34 = arith.constant dense<0.000000e+00> : vector<8xf32>
    %131 = vector.multi_reduction <add>, %130, %cst_34 [1] : vector<8x512xf32> to vector<8xf32>
    %132 = vector.shape_cast %131 : vector<8xf32> to vector<8x1xf32>
    %133 = vector.broadcast %12 : vector<1x1xf32> to vector<8x1xf32>
    %134 = arith.addf %132, %133 : vector<8x1xf32>
    %c0_35 = arith.constant 0 : index
    %c0_36 = arith.constant 0 : index
    %135 = vector.load %arg6[%c0_35, %c0_36] : memref<8x1xf32, #tpu.memory_space<vmem>>, vector<8x1xf32>
    tpu.vector_store %arg6[%c0_35, %c0_36], %134 {strides = array<i32>} : memref<8x1xf32, #tpu.memory_space<vmem>>, vector<8x1xf32>,
    return
  }
}

</mosaic_0001>

<llo_original>
// kernel: tpu_custom_call.1
$region0: #{tpu_custom_call.1}
  #allocation0 [shape = 'u32[]', space=smem, size = 0x4, offset = 0x4, fixed_abs, tag = 'smem constant byte address 0x4 - core index']
  #allocation1 [shape = 'u32[144,128]{1,0:T(1,128)}', space=vmem, size = 0x12000, scoped, tag = 'internal scratch']
  %s0 = inlined_call_operand.vmem [shape: f32[8,16], index: 0, kind: input, shape index: {}]
  %s1 = inlined_call_operand.vmem [shape: f32[8,4], index: 1, kind: input, shape index: {}]
  %s2 = inlined_call_operand.hbm [shape: bf16[16,512], index: 2, kind: input, shape index: {}]
  %s3 = inlined_call_operand.hbm [shape: bf16[512,512], index: 3, kind: input, shape index: {}]
  %s4 = inlined_call_operand.hbm [shape: bf16[512,512], index: 4, kind: input, shape index: {}]
  %s5 = inlined_call_operand.hbm [shape: f32[16,512], index: 5, kind: input, shape index: {}]
  %s6 = inlined_call_operand.vmem [shape: f32[8,1], index: 6, kind: output, shape index: {}]
  %s7 = sld [smem:[#allocation0]]
  $region50: #{tpu_custom_call.1} parent=0
    _
  %s9 = ssub.s32 1, %s7
  %s10 = scalar_select 0, %s9, %s7
  $region1: #{tpu_custom_call.1} parent=0
    #allocation2 [shape = 'u8[16384]{0}', space=vmem, size = 0x4000, scoped, tag = 'input window, operand 2, single buffered']
    #allocation3 [shape = 's32[1]{0}', space=sflag, size = 0x4, scoped, tag = 'scoped memory for tpu_custom_call.1']
    #allocation4 [shape = 'u8[524288]{0}', space=vmem, size = 0x80000, scoped, tag = 'input window, operand 3, single buffered']
    #allocation5 [shape = 's32[1]{0}', space=sflag, size = 0x4, scoped, tag = 'scoped memory for tpu_custom_call.1']
    #allocation6 [shape = 'u8[524288]{0}', space=vmem, size = 0x80000, scoped, tag = 'input window, operand 4, single buffered']
    #allocation7 [shape = 'u8[32768]{0}', space=vmem, size = 0x8000, scoped, tag = 'input window, operand 5, single buffered']
    #allocation8 [shape = 's32[1]{0}', space=sflag, size = 0x4, scoped, tag = 'scoped memory for tpu_custom_call.1']
    %11 = vsyncpa [#allocation3], 0
    %12 = vsyncpa [#allocation5], 0
    %13 = vsyncpa [#allocation8], 0
    // Predicated region
    $region2: #{tpu_custom_call.1} parent=1 // pred_check
      _
    $region3: #{tpu_custom_call.1} parent=1 // pred_check_branch
      %15 = sbr.rel (0) target = $region5
    $region4: #{tpu_custom_call.1} parent=1 // pred_region
      _
    $region5: #{tpu_custom_call.1} parent=1 // pred_fallthru
      _
    // Predicated region
    $region6: #{tpu_custom_call.1} parent=1 // pred_check
      _
    $region7: #{tpu_custom_call.1} parent=1 // pred_check_branch
      %17 = sbr.rel (0) target = $region9
    $region8: #{tpu_custom_call.1} parent=1 // pred_region
      _
    $region9: #{tpu_custom_call.1} parent=1 // pred_fallthru
      _
    // Predicated region
    $region10: #{tpu_custom_call.1} parent=1 // pred_check
      _
    $region11: #{tpu_custom_call.1} parent=1 // pred_check_branch
      %19 = sbr.rel (0) target = $region13
    $region12: #{tpu_custom_call.1} parent=1 // pred_region
      %s21 = ssub.s32 512, 512
      %22 = vsyncadd [#allocation3], %s21
      %s23 = sshll.u32 [#allocation2], 4
      %s24 = int_to_ptr.vmem [resolvable:$true] %s23
      %29 = dma.hbm_to_vmem [thread:$0]  %s2, 512, %s24, [#allocation3], 256, 256, 16
    $region13: #{tpu_custom_call.1} parent=1 // pred_fallthru
      _
    // Predicated region
    $region14: #{tpu_custom_call.1} parent=1 // pred_check
      _
    $region15: #{tpu_custom_call.1} parent=1 // pred_check_branch
      %31 = sbr.rel (0) target = $region17
    $region16: #{tpu_custom_call.1} parent=1 // pred_region
      %s33 = ssub.s32 16384, 16384
      %34 = vsyncadd [#allocation5], %s33
      %s35 = sshll.u32 [#allocation4], 4
      %s36 = int_to_ptr.vmem [resolvable:$true] %s35
      %41 = dma.hbm_to_vmem [thread:$0]  %s3, 16384, %s36, [#allocation5], 256, 256, 16
    $region17: #{tpu_custom_call.1} parent=1 // pred_fallthru
      _
    // Predicated region
    $region18: #{tpu_custom_call.1} parent=1 // pred_check
      _
    $region19: #{tpu_custom_call.1} parent=1 // pred_check_branch
      %43 = sbr.rel (0) target = $region21
    $region20: #{tpu_custom_call.1} parent=1 // pred_region
      %s45 = ssub.s32 16384, 16384
      %46 = vsyncadd [#allocation5], %s45
      %s47 = sshll.u32 [#allocation6], 4
      %s48 = int_to_ptr.vmem [resolvable:$true] %s47
      %53 = dma.hbm_to_vmem [thread:$0]  %s4, 16384, %s48, [#allocation5], 256, 256, 16
    $region21: #{tpu_custom_call.1} parent=1 // pred_fallthru
      _
    // Predicated region
    $region22: #{tpu_custom_call.1} parent=1 // pred_check
      _
    $region23: #{tpu_custom_call.1} parent=1 // pred_check_branch
      %55 = sbr.rel (0) target = $region25
    $region24: #{tpu_custom_call.1} parent=1 // pred_region
      %s57 = ssub.s32 1024, 1024
      %58 = vsyncadd [#allocation8], %s57
      %s59 = sshll.u32 [#allocation7], 4
      %s60 = int_to_ptr.vmem [resolvable:$true] %s59
      %65 = dma.hbm_to_vmem [thread:$0]  %s5, 1024, %s60, [#allocation8], 512, 512, 32
    $region25: #{tpu_custom_call.1} parent=1 // pred_fallthru
      _
    // Predicated region
    $region26: #{tpu_custom_call.1} parent=1 // pred_check
      _
    $region27: #{tpu_custom_call.1} parent=1 // pred_check_branch
      %67 = sbr.rel (0) target = $region29
    $region28: #{tpu_custom_call.1} parent=1 // pred_region
      %68 = dma.done [#allocation3], 512
    $region29: #{tpu_custom_call.1} parent=1 // pred_fallthru
      _
    // Predicated region
    $region30: #{tpu_custom_call.1} parent=1 // pred_check
      _
    $region31: #{tpu_custom_call.1} parent=1 // pred_check_branch
      %70 = sbr.rel (0) target = $region33
    $region32: #{tpu_custom_call.1} parent=1 // pred_region
      %71 = dma.done [#allocation5], 16384
    $region33: #{tpu_custom_call.1} parent=1 // pred_fallthru
      _
    // Predicated region
    $region34: #{tpu_custom_call.1} parent=1 // pred_check
      _
    $region35: #{tpu_custom_call.1} parent=1 // pred_check_branch
      %73 = sbr.rel (0) target = $region37
    $region36: #{tpu_custom_call.1} parent=1 // pred_region
      %74 = dma.done [#allocation5], 16384
    $region37: #{tpu_custom_call.1} parent=1 // pred_fallthru
      _
    // Predicated region
    $region38: #{tpu_custom_call.1} parent=1 // pred_check
      _
    $region39: #{tpu_custom_call.1} parent=1 // pred_check_branch
      %76 = sbr.rel (0) target = $region41
    $region40: #{tpu_custom_call.1} parent=1 // pred_region
      %77 = dma.done [#allocation8], 1024
    $region41: #{tpu_custom_call.1} parent=1 // pred_fallthru
      _
    %v79 = vld [vmem:[#allocation7] sm:$0xff]
    %v80 = vld [vmem:[#allocation7 + $0x8] sm:$0xff]
    %v81 = vld [vmem:[#allocation7 + $0x10] sm:$0xff]
    %v82 = vld [vmem:[#allocation7 + $0x18] sm:$0xff]
    %v83 = vld [vmem:[#allocation7 + $0x20] sm:$0xff]
    %v84 = vld [vmem:[#allocation7 + $0x28] sm:$0xff]
    %v85 = vld [vmem:[#allocation7 + $0x30] sm:$0xff]
    %v86 = vld [vmem:[#allocation7 + $0x38] sm:$0xff]
    %v87 = vld [vmem:[%s0] sm:$0xff]
    %v88 = vld [vmem:[%s1] sm:$0xff]
    %v89 = vpack.c.bf16 %v87, %v87
    %v90 = vld [vmem:[#allocation2] sm:$0xff]
    %v91 = vld [vmem:[#allocation2 + $0x8] sm:$0xff]
    %v92 = vld [vmem:[#allocation2 + $0x10] sm:$0xff]
    %v93 = vld [vmem:[#allocation2 + $0x18] sm:$0xff]
    %v94 = vlaneseq
    %v95 = vshrl.u32 %v94, 7
    %v96 = vsub.s32 0, %v95
    %v97 = vrot.slane %v79, %v96
    %v98 = vlaneseq
    %v99 = vshrl.u32 %v98, 7
    %v100 = vsub.s32 0, %v99
    %v101 = vrot.slane %v80, %v100
    %v102 = vlaneseq
    %v103 = vshrl.u32 %v102, 7
    %v104 = vsub.s32 0, %v103
    %v105 = vrot.slane %v81, %v104
    %v106 = vlaneseq
    %v107 = vshrl.u32 %v106, 7
    %v108 = vsub.s32 0, %v107
    %v109 = vrot.slane %v82, %v108
    %v114 = vunpack.c.l.b16 %v90
    %v115 = vunpack.c.h.b16 %v90
    %v116 = vunpack.c.l.b16 %v91
    %v117 = vunpack.c.h.b16 %v91
    %v118 = vunpack.c.l.b16 %v92
    %v119 = vunpack.c.h.b16 %v92
    %v120 = vunpack.c.l.b16 %v93
    %v121 = vunpack.c.h.b16 %v93
    %v122 = vpack.c.b16 %v118, %v114
    %v123 = vpack.c.b16 %v119, %v115
    %v124 = vpack.c.b16 %v120, %v116
    %v125 = vpack.c.b16 %v121, %v117
    %vm130 = vcmask 130048
    %v132 = vsel %vm130, %v89, 0
    %134 = vmatprep.subr.bf16.mxu0 0
    %135 = vmatpush1.bf16.msra.mxu0 0
    %136 = vmatprep.subr.bf16.mxu0 0
    %137 = vmatpush1.bf16.msra.mxu0 0
    %138 = vmatprep.subr.bf16.mxu0 0
    %139 = vmatpush1.bf16.msra.mxu0 0
    %140 = vmatprep.subr.bf16.mxu0 0
    %141 = vmatpush1.bf16.msra.mxu0 0
    %142 = vmatprep.subr.bf16.mxu0 0
    %143 = vmatpush1.bf16.msra.mxu0 0
    %144 = vmatprep.subr.bf16.mxu0 0
    %145 = vmatpush1.bf16.msra.mxu0 0
    %146 = vmatprep.subr.bf16.mxu0 0
    %147 = vmatpush1.bf16.msra.mxu0 0
    %148 = vmatprep.subr.bf16.mxu0 %v123
    %149 = vmatpush1.bf16.msra.mxu0 %v122
    %150 = vmatprep.subr.bf16.mxu0 0
    %151 = vmatpush2.bf16.msra.mxu0 0
    %152 = vmatprep.subr.bf16.mxu0 0
    %153 = vmatpush2.bf16.msra.mxu0 0
    %154 = vmatprep.subr.bf16.mxu0 0
    %155 = vmatpush2.bf16.msra.mxu0 0
    %156 = vmatprep.subr.bf16.mxu0 0
    %157 = vmatpush2.bf16.msra.mxu0 0
    %158 = vmatprep.subr.bf16.mxu0 0
    %159 = vmatpush2.bf16.msra.mxu0 0
    %160 = vmatprep.subr.bf16.mxu0 0
    %161 = vmatpush2.bf16.msra.mxu0 0
    %162 = vmatprep.subr.bf16.mxu0 0
    %163 = vmatpush2.bf16.msra.mxu0 0
    %164 = vmatprep.subr.bf16.mxu0 0
    %165 = vmatpush2.bf16.msra.mxu0 0
    %166 = vmatprep.mubr.bf16.mxu0 0
    %167 = vmatmul.mubr.bf16.gmra.mxu0 %v132
    %v168 = vpop.f32.mrf.mxu0
    %v169 = vadd.f32 %v97, %v168
    %v170 = vpop.f32.mrf.mxu0
    %v171 = vadd.f32 %v101, %v170
    %v172 = vpop.f32.mrf.mxu0
    %v173 = vpop.f32.mrf.mxu0
    %174 = vdwg.mxu0
    %175 = vmatprep.subr.bf16.mxu0 0
    %176 = vmatpush1.bf16.msra.mxu0 0
    %177 = vmatprep.subr.bf16.mxu0 0
    %178 = vmatpush1.bf16.msra.mxu0 0
    %179 = vmatprep.subr.bf16.mxu0 0
    %180 = vmatpush1.bf16.msra.mxu0 0
    %181 = vmatprep.subr.bf16.mxu0 0
    %182 = vmatpush1.bf16.msra.mxu0 0
    %183 = vmatprep.subr.bf16.mxu0 0
    %184 = vmatpush1.bf16.msra.mxu0 0
    %185 = vmatprep.subr.bf16.mxu0 0
    %186 = vmatpush1.bf16.msra.mxu0 0
    %187 = vmatprep.subr.bf16.mxu0 0
    %188 = vmatpush1.bf16.msra.mxu0 0
    %189 = vmatprep.subr.bf16.mxu0 %v125
    %190 = vmatpush1.bf16.msra.mxu0 %v124
    %191 = vmatprep.subr.bf16.mxu0 0
    %192 = vmatpush2.bf16.msra.mxu0 0
    %193 = vmatprep.subr.bf16.mxu0 0
    %194 = vmatpush2.bf16.msra.mxu0 0
    %195 = vmatprep.subr.bf16.mxu0 0
    %196 = vmatpush2.bf16.msra.mxu0 0
    %197 = vmatprep.subr.bf16.mxu0 0
    %198 = vmatpush2.bf16.msra.mxu0 0
    %199 = vmatprep.subr.bf16.mxu0 0
    %200 = vmatpush2.bf16.msra.mxu0 0
    %201 = vmatprep.subr.bf16.mxu0 0
    %202 = vmatpush2.bf16.msra.mxu0 0
    %203 = vmatprep.subr.bf16.mxu0 0
    %204 = vmatpush2.bf16.msra.mxu0 0
    %205 = vmatprep.subr.bf16.mxu0 0
    %206 = vmatpush2.bf16.msra.mxu0 0
    %207 = vmatprep.mubr.bf16.mxu0 0
    %208 = vmatmul.mubr.bf16.gmra.mxu0 %v132
    %v209 = vpop.f32.mrf.mxu0
    %v210 = vadd.f32 %v105, %v209
    %v211 = vpop.f32.mrf.mxu0
    %v212 = vadd.f32 %v109, %v211
    %v213 = vpop.f32.mrf.mxu0
    %v214 = vpop.f32.mrf.mxu0
    %215 = vdwg.mxu0
    %v216 = vrot.slane %v169, 4
    %v217 = vadd.f32 %v169, %v216
    %v218 = vrot.slane %v217, 2
    %v219 = vadd.f32 %v217, %v218
    %v220 = vrot.slane %v219, 1
    %v221 = vadd.f32 %v219, %v220
    %v222 = vrot.slane %v171, 4
    %v223 = vadd.f32 %v171, %v222
    %v224 = vrot.slane %v223, 2
    %v225 = vadd.f32 %v223, %v224
    %v226 = vrot.slane %v225, 1
    %v227 = vadd.f32 %v225, %v226
    %v228 = vrot.slane %v210, 4
    %v229 = vadd.f32 %v210, %v228
    %v230 = vrot.slane %v229, 2
    %v231 = vadd.f32 %v229, %v230
    %v232 = vrot.slane %v231, 1
    %v233 = vadd.f32 %v231, %v232
    %v234 = vrot.slane %v212, 4
    %v235 = vadd.f32 %v212, %v234
    %v236 = vrot.slane %v235, 2
    %v237 = vadd.f32 %v235, %v236
    %v238 = vrot.slane %v237, 1
    %v239 = vadd.f32 %v237, %v238
    %v240 = vrcp.pop 8.0
    %v241 = vmul.f32 %v221, %v240
    %v242 = vmul.f32 %v227, %v240
    %v243 = vmul.f32 %v233, %v240
    %v244 = vmul.f32 %v239, %v240
    %v245 = vmul.f32 %v169, %v169
    %v246 = vmul.f32 %v171, %v171
    %v247 = vmul.f32 %v210, %v210
    %v248 = vmul.f32 %v212, %v212
    %v249 = vrot.slane %v245, 4
    %v250 = vadd.f32 %v245, %v249
    %v251 = vrot.slane %v250, 2
    %v252 = vadd.f32 %v250, %v251
    %v253 = vrot.slane %v252, 1
    %v254 = vadd.f32 %v252, %v253
    %v255 = vrot.slane %v246, 4
    %v256 = vadd.f32 %v246, %v255
    %v257 = vrot.slane %v256, 2
    %v258 = vadd.f32 %v256, %v257
    %v259 = vrot.slane %v258, 1
    %v260 = vadd.f32 %v258, %v259
    %v261 = vrot.slane %v247, 4
    %v262 = vadd.f32 %v247, %v261
    %v263 = vrot.slane %v262, 2
    %v264 = vadd.f32 %v262, %v263
    %v265 = vrot.slane %v264, 1
    %v266 = vadd.f32 %v264, %v265
    %v267 = vrot.slane %v248, 4
    %v268 = vadd.f32 %v248, %v267
    %v269 = vrot.slane %v268, 2
    %v270 = vadd.f32 %v268, %v269
    %v271 = vrot.slane %v270, 1
    %v272 = vadd.f32 %v270, %v271
    %v273 = vmul.f32 %v254, %v240
    %v274 = vmul.f32 %v260, %v240
    %v275 = vmul.f32 %v266, %v240
    %v276 = vmul.f32 %v272, %v240
    %v277 = vmul.f32 %v241, %v241
    %v278 = vmul.f32 %v242, %v242
    %v279 = vmul.f32 %v243, %v243
    %v280 = vmul.f32 %v244, %v244
    %v281 = vsub.f32 %v273, %v277
    %v282 = vsub.f32 %v274, %v278
    %v283 = vsub.f32 %v275, %v279
    %v284 = vsub.f32 %v276, %v280
    %v285 = vmax.f32 %v281, 0.0
    %v286 = vmax.f32 %v282, 0.0
    %v287 = vmax.f32 %v283, 0.0
    %v288 = vmax.f32 %v284, 0.0
    %v289 = vadd.f32 %v285, 1e-05
    %v290 = vadd.f32 %v286, 1e-05
    %v291 = vadd.f32 %v287, 1e-05
    %v292 = vadd.f32 %v288, 1e-05
    %v293 = vrsqrt.pop %v289
    %v294 = vrsqrt.pop %v290
    %v295 = vrsqrt.pop %v291
    %v296 = vrsqrt.pop %v292
    %v297 = vmul.f32 %v79, %v293
    %v298 = vmul.f32 %v80, %v294
    %v299 = vmul.f32 %v81, %v295
    %v300 = vmul.f32 %v82, %v296
    %v301 = vmul.f32 %v241, %v297
    %v302 = vmul.f32 %v242, %v298
    %v303 = vmul.f32 %v243, %v299
    %v304 = vmul.f32 %v244, %v300
    %v309 = vrot.slane %v301, 7
    %v310 = vrot.slane %v302, 7
    %v311 = vrot.slane %v303, 7
    %v312 = vrot.slane %v304, 7
    %v317 = vsub.f32 %v79, %v309
    %v318 = vsub.f32 %v80, %v310
    %v319 = vsub.f32 %v81, %v311
    %v320 = vsub.f32 %v82, %v312
    %v321 = vlaneseq
    %v322 = vshrl.u32 %v321, 7
    %v323 = vsub.s32 1, %v322
    %v324 = vrot.slane %v297, %v323
    %v325 = vlaneseq
    %v326 = vshrl.u32 %v325, 7
    %v327 = vsub.s32 1, %v326
    %v328 = vrot.slane %v298, %v327
    %v329 = vlaneseq
    %v330 = vshrl.u32 %v329, 7
    %v331 = vsub.s32 1, %v330
    %v332 = vrot.slane %v299, %v331
    %v333 = vlaneseq
    %v334 = vshrl.u32 %v333, 7
    %v335 = vsub.s32 1, %v334
    %v336 = vrot.slane %v300, %v335
    %v337 = vmul.f32 %v169, %v324
    %v338 = vmul.f32 %v171, %v328
    %v339 = vmul.f32 %v210, %v332
    %v340 = vmul.f32 %v212, %v336
    %v341 = vlaneseq
    %v342 = vshrl.u32 %v341, 7
    %v343 = vsub.s32 2, %v342
    %v344 = vrot.slane %v317, %v343
    %v345 = vlaneseq
    %v346 = vshrl.u32 %v345, 7
    %v347 = vsub.s32 2, %v346
    %v348 = vrot.slane %v318, %v347
    %v349 = vlaneseq
    %v350 = vshrl.u32 %v349, 7
    %v351 = vsub.s32 2, %v350
    %v352 = vrot.slane %v319, %v351
    %v353 = vlaneseq
    %v354 = vshrl.u32 %v353, 7
    %v355 = vsub.s32 2, %v354
    %v356 = vrot.slane %v320, %v355
    %v357 = vadd.f32 %v337, %v344
    %v358 = vadd.f32 %v338, %v348
    %v359 = vadd.f32 %v339, %v352
    %v360 = vadd.f32 %v340, %v356
    %v361 = vmax.f32 %v357, 0.0
    %v362 = vmax.f32 %v358, 0.0
    %v363 = vmax.f32 %v359, 0.0
    %v364 = vmax.f32 %v360, 0.0
    %v365 = vpack.c.bf16 %v361, %v361
    %v366 = vpack.c.bf16 %v362, %v362
    %v367 = vpack.c.bf16 %v363, %v363
    %v368 = vpack.c.bf16 %v364, %v364
    %v369 = vld [vmem:[#allocation4] sm:$0xff]
    %v370 = vld [vmem:[#allocation4 + $0x8] sm:$0xff]
    %v371 = vld [vmem:[#allocation4 + $0x10] sm:$0xff]
    %v372 = vld [vmem:[#allocation4 + $0x18] sm:$0xff]
    %v373 = vld [vmem:[#allocation4 + $0x20] sm:$0xff]
    %v374 = vld [vmem:[#allocation4 + $0x28] sm:$0xff]
    %v375 = vld [vmem:[#allocation4 + $0x30] sm:$0xff]
    %v376 = vld [vmem:[#allocation4 + $0x38] sm:$0xff]
    %v377 = vld [vmem:[#allocation4 + $0x40] sm:$0xff]
    %v378 = vld [vmem:[#allocation4 + $0x48] sm:$0xff]
    %v379 = vld [vmem:[#allocation4 + $0x50] sm:$0xff]
    %v380 = vld [vmem:[#allocation4 + $0x58] sm:$0xff]
    %v381 = vld [vmem:[#allocation4 + $0x60] sm:$0xff]
    %v382 = vld [vmem:[#allocation4 + $0x68] sm:$0xff]
    %v383 = vld [vmem:[#allocation4 + $0x70] sm:$0xff]
    %v384 = vld [vmem:[#allocation4 + $0x78] sm:$0xff]
    %v385 = vld [vmem:[#allocation4 + $0x80] sm:$0xff]
    %v386 = vld [vmem:[#allocation4 + $0x88] sm:$0xff]
    %v387 = vld [vmem:[#allocation4 + $0x90] sm:$0xff]
    %v388 = vld [vmem:[#allocation4 + $0x98] sm:$0xff]
    %v389 = vld [vmem:[#allocation4 + $0xa0] sm:$0xff]
    %v390 = vld [vmem:[#allocation4 + $0xa8] sm:$0xff]
    %v391 = vld [vmem:[#allocation4 + $0xb0] sm:$0xff]
    %v392 = vld [vmem:[#allocation4 + $0xb8] sm:$0xff]
    %v393 = vld [vmem:[#allocation4 + $0xc0] sm:$0xff]
    %v394 = vld [vmem:[#allocation4 + $0xc8] sm:$0xff]
    %v395 = vld [vmem:[#allocation4 + $0xd0] sm:$0xff]
    %v396 = vld [vmem:[#allocation4 + $0xd8] sm:$0xff]
    %v397 = vld [vmem:[#allocation4 + $0xe0] sm:$0xff]
    %v398 = vld [vmem:[#allocation4 + $0xe8] sm:$0xff]
    %v399 = vld [vmem:[#allocation4 + $0xf0] sm:$0xff]
    %v400 = vld [vmem:[#allocation4 + $0xf8] sm:$0xff]
    %v401 = vld [vmem:[#allocation4 + $0x100] sm:$0xff]
    %v402 = vld [vmem:[#allocation4 + $0x108] sm:$0xff]
    %v403 = vld [vmem:[#allocation4 + $0x110] sm:$0xff]
    %v404 = vld [vmem:[#allocation4 + $0x118] sm:$0xff]
    %v405 = vld [vmem:[#allocation4 + $0x120] sm:$0xff]
    %v406 = vld [vmem:[#allocation4 + $0x128] sm:$0xff]
    %v407 = vld [vmem:[#allocation4 + $0x130] sm:$0xff]
    %v408 = vld [vmem:[#allocation4 + $0x138] sm:$0xff]
    %v409 = vld [vmem:[#allocation4 + $0x140] sm:$0xff]
    %v410 = vld [vmem:[#allocation4 + $0x148] sm:$0xff]
    %v411 = vld [vmem:[#allocation4 + $0x150] sm:$0xff]
    %v412 = vld [vmem:[#allocation4 + $0x158] sm:$0xff]
    %v413 = vld [vmem:[#allocation4 + $0x160] sm:$0xff]
    %v414 = vld [vmem:[#allocation4 + $0x168] sm:$0xff]
    %v415 = vld [vmem:[#allocation4 + $0x170] sm:$0xff]
    %v416 = vld [vmem:[#allocation4 + $0x178] sm:$0xff]
    %v417 = vld [vmem:[#allocation4 + $0x180] sm:$0xff]
    %v418 = vld [vmem:[#allocation4 + $0x188] sm:$0xff]
    %v419 = vld [vmem:[#allocation4 + $0x190] sm:$0xff]
    %v420 = vld [vmem:[#allocation4 + $0x198] sm:$0xff]
    %v421 = vld [vmem:[#allocation4 + $0x1a0] sm:$0xff]
    %v422 = vld [vmem:[#allocation4 + $0x1a8] sm:$0xff]
    %v423 = vld [vmem:[#allocation4 + $0x1b0] sm:$0xff]
    %v424 = vld [vmem:[#allocation4 + $0x1b8] sm:$0xff]
    %v425 = vld [vmem:[#allocation4 + $0x1c0] sm:$0xff]
    %v426 = vld [vmem:[#allocation4 + $0x1c8] sm:$0xff]
    %v427 = vld [vmem:[#allocation4 + $0x1d0] sm:$0xff]
    %v428 = vld [vmem:[#allocation4 + $0x1d8] sm:$0xff]
    %v429 = vld [vmem:[#allocation4 + $0x1e0] sm:$0xff]
    %v430 = vld [vmem:[#allocation4 + $0x1e8] sm:$0xff]
    %v431 = vld [vmem:[#allocation4 + $0x1f0] sm:$0xff]
    %v432 = vld [vmem:[#allocation4 + $0x1f8] sm:$0xff]
    %v433 = vld [vmem:[#allocation4 + $0x200] sm:$0xff]
    %v434 = vld [vmem:[#allocation4 + $0x208] sm:$0xff]
    %v435 = vld [vmem:[#allocation4 + $0x210] sm:$0xff]
    %v436 = vld [vmem:[#allocation4 + $0x218] sm:$0xff]
    %v437 = vld [vmem:[#allocation4 + $0x220] sm:$0xff]
    %v438 = vld [vmem:[#allocation4 + $0x228] sm:$0xff]
    %v439 = vld [vmem:[#allocation4 + $0x230] sm:$0xff]
    %v440 = vld [vmem:[#allocation4 + $0x238] sm:$0xff]
    %v441 = vld [vmem:[#allocation4 + $0x240] sm:$0xff]
    %v442 = vld [vmem:[#allocation4 + $0x248] sm:$0xff]
    %v443 = vld [vmem:[#allocation4 + $0x250] sm:$0xff]
    %v444 = vld [vmem:[#allocation4 + $0x258] sm:$0xff]
    %v445 = vld [vmem:[#allocation4 + $0x260] sm:$0xff]
    %v446 = vld [vmem:[#allocation4 + $0x268] sm:$0xff]
    %v447 = vld [vmem:[#allocation4 + $0x270] sm:$0xff]
    %v448 = vld [vmem:[#allocation4 + $0x278] sm:$0xff]
    %v449 = vld [vmem:[#allocation4 + $0x280] sm:$0xff]
    %v450 = vld [vmem:[#allocation4 + $0x288] sm:$0xff]
    %v451 = vld [vmem:[#allocation4 + $0x290] sm:$0xff]
    %v452 = vld [vmem:[#allocation4 + $0x298] sm:$0xff]
    %v453 = vld [vmem:[#allocation4 + $0x2a0] sm:$0xff]
    %v454 = vld [vmem:[#allocation4 + $0x2a8] sm:$0xff]
    %v455 = vld [vmem:[#allocation4 + $0x2b0] sm:$0xff]
    %v456 = vld [vmem:[#allocation4 + $0x2b8] sm:$0xff]
    %v457 = vld [vmem:[#allocation4 + $0x2c0] sm:$0xff]
    %v458 = vld [vmem:[#allocation4 + $0x2c8] sm:$0xff]
    %v459 = vld [vmem:[#allocation4 + $0x2d0] sm:$0xff]
    %v460 = vld [vmem:[#allocation4 + $0x2d8] sm:$0xff]
    %v461 = vld [vmem:[#allocation4 + $0x2e0] sm:$0xff]
    %v462 = vld [vmem:[#allocation4 + $0x2e8] sm:$0xff]
    %v463 = vld [vmem:[#allocation4 + $0x2f0] sm:$0xff]
    %v464 = vld [vmem:[#allocation4 + $0x2f8] sm:$0xff]
    %v465 = vld [vmem:[#allocation4 + $0x300] sm:$0xff]
    %v466 = vld [vmem:[#allocation4 + $0x308] sm:$0xff]
    %v467 = vld [vmem:[#allocation4 + $0x310] sm:$0xff]
    %v468 = vld [vmem:[#allocation4 + $0x318] sm:$0xff]
    %v469 = vld [vmem:[#allocation4 + $0x320] sm:$0xff]
    %v470 = vld [vmem:[#allocation4 + $0x328] sm:$0xff]
    %v471 = vld [vmem:[#allocation4 + $0x330] sm:$0xff]
    %v472 = vld [vmem:[#allocation4 + $0x338] sm:$0xff]
    %v473 = vld [vmem:[#allocation4 + $0x340] sm:$0xff]
    %v474 = vld [vmem:[#allocation4 + $0x348] sm:$0xff]
    %v475 = vld [vmem:[#allocation4 + $0x350] sm:$0xff]
    %v476 = vld [vmem:[#allocation4 + $0x358] sm:$0xff]
    %v477 = vld [vmem:[#allocation4 + $0x360] sm:$0xff]
    %v478 = vld [vmem:[#allocation4 + $0x368] sm:$0xff]
    %v479 = vld [vmem:[#allocation4 + $0x370] sm:$0xff]
    %v480 = vld [vmem:[#allocation4 + $0x378] sm:$0xff]
    %v481 = vld [vmem:[#allocation4 + $0x380] sm:$0xff]
    %v482 = vld [vmem:[#allocation4 + $0x388] sm:$0xff]
    %v483 = vld [vmem:[#allocation4 + $0x390] sm:$0xff]
    %v484 = vld [vmem:[#allocation4 + $0x398] sm:$0xff]
    %v485 = vld [vmem:[#allocation4 + $0x3a0] sm:$0xff]
    %v486 = vld [vmem:[#allocation4 + $0x3a8] sm:$0xff]
    %v487 = vld [vmem:[#allocation4 + $0x3b0] sm:$0xff]
    %v488 = vld [vmem:[#allocation4 + $0x3b8] sm:$0xff]
    %v489 = vld [vmem:[#allocation4 + $0x3c0] sm:$0xff]
    %v490 = vld [vmem:[#allocation4 + $0x3c8] sm:$0xff]
    %v491 = vld [vmem:[#allocation4 + $0x3d0] sm:$0xff]
    %v492 = vld [vmem:[#allocation4 + $0x3d8] sm:$0xff]
    %v493 = vld [vmem:[#allocation4 + $0x3e0] sm:$0xff]
    %v494 = vld [vmem:[#allocation4 + $0x3e8] sm:$0xff]
    %v495 = vld [vmem:[#allocation4 + $0x3f0] sm:$0xff]
    %v496 = vld [vmem:[#allocation4 + $0x3f8] sm:$0xff]
    %v497 = vlaneseq
    %v498 = vshrl.u32 %v497, 7
    %v499 = vsub.s32 3, %v498
    %v500 = vrot.slane %v79, %v499
    %v501 = vlaneseq
    %v502 = vshrl.u32 %v501, 7
    %v503 = vsub.s32 3, %v502
    %v504 = vrot.slane %v80, %v503
    %v505 = vlaneseq
    %v506 = vshrl.u32 %v505, 7
    %v507 = vsub.s32 3, %v506
    %v508 = vrot.slane %v81, %v507
    %v509 = vlaneseq
    %v510 = vshrl.u32 %v509, 7
    %v511 = vsub.s32 3, %v510
    %v512 = vrot.slane %v82, %v511
    %v641 = vunpack.c.l.b16 %v369
    %v642 = vunpack.c.h.b16 %v369
    %v643 = vunpack.c.l.b16 %v370
    %v644 = vunpack.c.h.b16 %v370
    %v645 = vunpack.c.l.b16 %v371
    %v646 = vunpack.c.h.b16 %v371
    %v647 = vunpack.c.l.b16 %v372
    %v648 = vunpack.c.h.b16 %v372
    %v649 = vunpack.c.l.b16 %v373
    %v650 = vunpack.c.h.b16 %v373
    %v651 = vunpack.c.l.b16 %v374
    %v652 = vunpack.c.h.b16 %v374
    %v653 = vunpack.c.l.b16 %v375
    %v654 = vunpack.c.h.b16 %v375
    %v655 = vunpack.c.l.b16 %v376
    %v656 = vunpack.c.h.b16 %v376
    %v657 = vunpack.c.l.b16 %v377
    %v658 = vunpack.c.h.b16 %v377
    %v659 = vunpack.c.l.b16 %v378
    %v660 = vunpack.c.h.b16 %v378
    %v661 = vunpack.c.l.b16 %v379
    %v662 = vunpack.c.h.b16 %v379
    %v663 = vunpack.c.l.b16 %v380
    %v664 = vunpack.c.h.b16 %v380
    %v665 = vunpack.c.l.b16 %v381
    %v666 = vunpack.c.h.b16 %v381
    %v667 = vunpack.c.l.b16 %v382
    %v668 = vunpack.c.h.b16 %v382
    %v669 = vunpack.c.l.b16 %v383
    %v670 = vunpack.c.h.b16 %v383
    %v671 = vunpack.c.l.b16 %v384
    %v672 = vunpack.c.h.b16 %v384
    %v673 = vunpack.c.l.b16 %v385
    %v674 = vunpack.c.h.b16 %v385
    %v675 = vunpack.c.l.b16 %v386
    %v676 = vunpack.c.h.b16 %v386
    %v677 = vunpack.c.l.b16 %v387
    %v678 = vunpack.c.h.b16 %v387
    %v679 = vunpack.c.l.b16 %v388
    %v680 = vunpack.c.h.b16 %v388
    %v681 = vunpack.c.l.b16 %v389
    %v682 = vunpack.c.h.b16 %v389
    %v683 = vunpack.c.l.b16 %v390
    %v684 = vunpack.c.h.b16 %v390
    %v685 = vunpack.c.l.b16 %v391
    %v686 = vunpack.c.h.b16 %v391
    %v687 = vunpack.c.l.b16 %v392
    %v688 = vunpack.c.h.b16 %v392
    %v689 = vunpack.c.l.b16 %v393
    %v690 = vunpack.c.h.b16 %v393
    %v691 = vunpack.c.l.b16 %v394
    %v692 = vunpack.c.h.b16 %v394
    %v693 = vunpack.c.l.b16 %v395
    %v694 = vunpack.c.h.b16 %v395
    %v695 = vunpack.c.l.b16 %v396
    %v696 = vunpack.c.h.b16 %v396
    %v697 = vunpack.c.l.b16 %v397
    %v698 = vunpack.c.h.b16 %v397
    %v699 = vunpack.c.l.b16 %v398
    %v700 = vunpack.c.h.b16 %v398
    %v701 = vunpack.c.l.b16 %v399
    %v702 = vunpack.c.h.b16 %v399
    %v703 = vunpack.c.l.b16 %v400
    %v704 = vunpack.c.h.b16 %v400
    %v705 = vunpack.c.l.b16 %v401
    %v706 = vunpack.c.h.b16 %v401
    %v707 = vunpack.c.l.b16 %v402
    %v708 = vunpack.c.h.b16 %v402
    %v709 = vunpack.c.l.b16 %v403
    %v710 = vunpack.c.h.b16 %v403
    %v711 = vunpack.c.l.b16 %v404
    %v712 = vunpack.c.h.b16 %v404
    %v713 = vunpack.c.l.b16 %v405
    %v714 = vunpack.c.h.b16 %v405
    %v715 = vunpack.c.l.b16 %v406
    %v716 = vunpack.c.h.b16 %v406
    %v717 = vunpack.c.l.b16 %v407
    %v718 = vunpack.c.h.b16 %v407
    %v719 = vunpack.c.l.b16 %v408
    %v720 = vunpack.c.h.b16 %v408
    %v721 = vunpack.c.l.b16 %v409
    %v722 = vunpack.c.h.b16 %v409
    %v723 = vunpack.c.l.b16 %v410
    %v724 = vunpack.c.h.b16 %v410
    %v725 = vunpack.c.l.b16 %v411
    %v726 = vunpack.c.h.b16 %v411
    %v727 = vunpack.c.l.b16 %v412
    %v728 = vunpack.c.h.b16 %v412
    %v729 = vunpack.c.l.b16 %v413
    %v730 = vunpack.c.h.b16 %v413
    %v731 = vunpack.c.l.b16 %v414
    %v732 = vunpack.c.h.b16 %v414
    %v733 = vunpack.c.l.b16 %v415
    %v734 = vunpack.c.h.b16 %v415
    %v735 = vunpack.c.l.b16 %v416
    %v736 = vunpack.c.h.b16 %v416
    %v737 = vunpack.c.l.b16 %v417
    %v738 = vunpack.c.h.b16 %v417
    %v739 = vunpack.c.l.b16 %v418
    %v740 = vunpack.c.h.b16 %v418
    %v741 = vunpack.c.l.b16 %v419
    %v742 = vunpack.c.h.b16 %v419
    %v743 = vunpack.c.l.b16 %v420
    %v744 = vunpack.c.h.b16 %v420
    %v745 = vunpack.c.l.b16 %v421
    %v746 = vunpack.c.h.b16 %v421
    %v747 = vunpack.c.l.b16 %v422
    %v748 = vunpack.c.h.b16 %v422
    %v749 = vunpack.c.l.b16 %v423
    %v750 = vunpack.c.h.b16 %v423
    %v751 = vunpack.c.l.b16 %v424
    %v752 = vunpack.c.h.b16 %v424
    %v753 = vunpack.c.l.b16 %v425
    %v754 = vunpack.c.h.b16 %v425
    %v755 = vunpack.c.l.b16 %v426
    %v756 = vunpack.c.h.b16 %v426
    %v757 = vunpack.c.l.b16 %v427
    %v758 = vunpack.c.h.b16 %v427
    %v759 = vunpack.c.l.b16 %v428
    %v760 = vunpack.c.h.b16 %v428
    %v761 = vunpack.c.l.b16 %v429
    %v762 = vunpack.c.h.b16 %v429
    %v763 = vunpack.c.l.b16 %v430
    %v764 = vunpack.c.h.b16 %v430
    %v765 = vunpack.c.l.b16 %v431
    %v766 = vunpack.c.h.b16 %v431
    %v767 = vunpack.c.l.b16 %v432
    %v768 = vunpack.c.h.b16 %v432
    %v769 = vunpack.c.l.b16 %v433
    %v770 = vunpack.c.h.b16 %v433
    %v771 = vunpack.c.l.b16 %v434
    %v772 = vunpack.c.h.b16 %v434
    %v773 = vunpack.c.l.b16 %v435
    %v774 = vunpack.c.h.b16 %v435
    %v775 = vunpack.c.l.b16 %v436
    %v776 = vunpack.c.h.b16 %v436
    %v777 = vunpack.c.l.b16 %v437
    %v778 = vunpack.c.h.b16 %v437
    %v779 = vunpack.c.l.b16 %v438
    %v780 = vunpack.c.h.b16 %v438
    %v781 = vunpack.c.l.b16 %v439
    %v782 = vunpack.c.h.b16 %v439
    %v783 = vunpack.c.l.b16 %v440
    %v784 = vunpack.c.h.b16 %v440
    %v785 = vunpack.c.l.b16 %v441
    %v786 = vunpack.c.h.b16 %v441
    %v787 = vunpack.c.l.b16 %v442
    %v788 = vunpack.c.h.b16 %v442
    %v789 = vunpack.c.l.b16 %v443
    %v790 = vunpack.c.h.b16 %v443
    %v791 = vunpack.c.l.b16 %v444
    %v792 = vunpack.c.h.b16 %v444
    %v793 = vunpack.c.l.b16 %v445
    %v794 = vunpack.c.h.b16 %v445
    %v795 = vunpack.c.l.b16 %v446
    %v796 = vunpack.c.h.b16 %v446
    %v797 = vunpack.c.l.b16 %v447
    %v798 = vunpack.c.h.b16 %v447
    %v799 = vunpack.c.l.b16 %v448
    %v800 = vunpack.c.h.b16 %v448
    %v801 = vunpack.c.l.b16 %v449
    %v802 = vunpack.c.h.b16 %v449
    %v803 = vunpack.c.l.b16 %v450
    %v804 = vunpack.c.h.b16 %v450
    %v805 = vunpack.c.l.b16 %v451
    %v806 = vunpack.c.h.b16 %v451
    %v807 = vunpack.c.l.b16 %v452
    %v808 = vunpack.c.h.b16 %v452
    %v809 = vunpack.c.l.b16 %v453
    %v810 = vunpack.c.h.b16 %v453
    %v811 = vunpack.c.l.b16 %v454
    %v812 = vunpack.c.h.b16 %v454
    %v813 = vunpack.c.l.b16 %v455
    %v814 = vunpack.c.h.b16 %v455
    %v815 = vunpack.c.l.b16 %v456
    %v816 = vunpack.c.h.b16 %v456
    %v817 = vunpack.c.l.b16 %v457
    %v818 = vunpack.c.h.b16 %v457
    %v819 = vunpack.c.l.b16 %v458
    %v820 = vunpack.c.h.b16 %v458
    %v821 = vunpack.c.l.b16 %v459
    %v822 = vunpack.c.h.b16 %v459
    %v823 = vunpack.c.l.b16 %v460
    %v824 = vunpack.c.h.b16 %v460
    %v825 = vunpack.c.l.b16 %v461
    %v826 = vunpack.c.h.b16 %v461
    %v827 = vunpack.c.l.b16 %v462
    %v828 = vunpack.c.h.b16 %v462
    %v829 = vunpack.c.l.b16 %v463
    %v830 = vunpack.c.h.b16 %v463
    %v831 = vunpack.c.l.b16 %v464
    %v832 = vunpack.c.h.b16 %v464
    %v833 = vunpack.c.l.b16 %v465
    %v834 = vunpack.c.h.b16 %v465
    %v835 = vunpack.c.l.b16 %v466
    %v836 = vunpack.c.h.b16 %v466
    %v837 = vunpack.c.l.b16 %v467
    %v838 = vunpack.c.h.b16 %v467
    %v839 = vunpack.c.l.b16 %v468
    %v840 = vunpack.c.h.b16 %v468
    %v841 = vunpack.c.l.b16 %v469
    %v842 = vunpack.c.h.b16 %v469
    %v843 = vunpack.c.l.b16 %v470
    %v844 = vunpack.c.h.b16 %v470
    %v845 = vunpack.c.l.b16 %v471
    %v846 = vunpack.c.h.b16 %v471
    %v847 = vunpack.c.l.b16 %v472
    %v848 = vunpack.c.h.b16 %v472
    %v849 = vunpack.c.l.b16 %v473
    %v850 = vunpack.c.h.b16 %v473
    %v851 = vunpack.c.l.b16 %v474
    %v852 = vunpack.c.h.b16 %v474
    %v853 = vunpack.c.l.b16 %v475
    %v854 = vunpack.c.h.b16 %v475
    %v855 = vunpack.c.l.b16 %v476
    %v856 = vunpack.c.h.b16 %v476
    %v857 = vunpack.c.l.b16 %v477
    %v858 = vunpack.c.h.b16 %v477
    %v859 = vunpack.c.l.b16 %v478
    %v860 = vunpack.c.h.b16 %v478
    %v861 = vunpack.c.l.b16 %v479
    %v862 = vunpack.c.h.b16 %v479
    %v863 = vunpack.c.l.b16 %v480
    %v864 = vunpack.c.h.b16 %v480
    %v865 = vunpack.c.l.b16 %v481
    %v866 = vunpack.c.h.b16 %v481
    %v867 = vunpack.c.l.b16 %v482
    %v868 = vunpack.c.h.b16 %v482
    %v869 = vunpack.c.l.b16 %v483
    %v870 = vunpack.c.h.b16 %v483
    %v871 = vunpack.c.l.b16 %v484
    %v872 = vunpack.c.h.b16 %v484
    %v873 = vunpack.c.l.b16 %v485
    %v874 = vunpack.c.h.b16 %v485
    %v875 = vunpack.c.l.b16 %v486
    %v876 = vunpack.c.h.b16 %v486
    %v877 = vunpack.c.l.b16 %v487
    %v878 = vunpack.c.h.b16 %v487
    %v879 = vunpack.c.l.b16 %v488
    %v880 = vunpack.c.h.b16 %v488
    %v881 = vunpack.c.l.b16 %v489
    %v882 = vunpack.c.h.b16 %v489
    %v883 = vunpack.c.l.b16 %v490
    %v884 = vunpack.c.h.b16 %v490
    %v885 = vunpack.c.l.b16 %v491
    %v886 = vunpack.c.h.b16 %v491
    %v887 = vunpack.c.l.b16 %v492
    %v888 = vunpack.c.h.b16 %v492
    %v889 = vunpack.c.l.b16 %v493
    %v890 = vunpack.c.h.b16 %v493
    %v891 = vunpack.c.l.b16 %v494
    %v892 = vunpack.c.h.b16 %v494
    %v893 = vunpack.c.l.b16 %v495
    %v894 = vunpack.c.h.b16 %v495
    %v895 = vunpack.c.l.b16 %v496
    %v896 = vunpack.c.h.b16 %v496
    %v897 = vpack.c.b16 %v645, %v641
    %v898 = vpack.c.b16 %v646, %v642
    %v899 = vpack.c.b16 %v647, %v643
    %v900 = vpack.c.b16 %v648, %v644
    %v901 = vpack.c.b16 %v653, %v649
    %v902 = vpack.c.b16 %v654, %v650
    %v903 = vpack.c.b16 %v655, %v651
    %v904 = vpack.c.b16 %v656, %v652
    %v905 = vpack.c.b16 %v661, %v657
    %v906 = vpack.c.b16 %v662, %v658
    %v907 = vpack.c.b16 %v663, %v659
    %v908 = vpack.c.b16 %v664, %v660
    %v909 = vpack.c.b16 %v669, %v665
    %v910 = vpack.c.b16 %v670, %v666
    %v911 = vpack.c.b16 %v671, %v667
    %v912 = vpack.c.b16 %v672, %v668
    %v913 = vpack.c.b16 %v677, %v673
    %v914 = vpack.c.b16 %v678, %v674
    %v915 = vpack.c.b16 %v679, %v675
    %v916 = vpack.c.b16 %v680, %v676
    %v917 = vpack.c.b16 %v685, %v681
    %v918 = vpack.c.b16 %v686, %v682
    %v919 = vpack.c.b16 %v687, %v683
    %v920 = vpack.c.b16 %v688, %v684
    %v921 = vpack.c.b16 %v693, %v689
    %v922 = vpack.c.b16 %v694, %v690
    %v923 = vpack.c.b16 %v695, %v691
    %v924 = vpack.c.b16 %v696, %v692
    %v925 = vpack.c.b16 %v701, %v697
    %v926 = vpack.c.b16 %v702, %v698
    %v927 = vpack.c.b16 %v703, %v699
    %v928 = vpack.c.b16 %v704, %v700
    %v929 = vpack.c.b16 %v709, %v705
    %v930 = vpack.c.b16 %v710, %v706
    %v931 = vpack.c.b16 %v711, %v707
    %v932 = vpack.c.b16 %v712, %v708
    %v933 = vpack.c.b16 %v717, %v713
    %v934 = vpack.c.b16 %v718, %v714
    %v935 = vpack.c.b16 %v719, %v715
    %v936 = vpack.c.b16 %v720, %v716
    %v937 = vpack.c.b16 %v725, %v721
    %v938 = vpack.c.b16 %v726, %v722
    %v939 = vpack.c.b16 %v727, %v723
    %v940 = vpack.c.b16 %v728, %v724
    %v941 = vpack.c.b16 %v733, %v729
    %v942 = vpack.c.b16 %v734, %v730
    %v943 = vpack.c.b16 %v735, %v731
    %v944 = vpack.c.b16 %v736, %v732
    %v945 = vpack.c.b16 %v741, %v737
    %v946 = vpack.c.b16 %v742, %v738
    %v947 = vpack.c.b16 %v743, %v739
    %v948 = vpack.c.b16 %v744, %v740
    %v949 = vpack.c.b16 %v749, %v745
    %v950 = vpack.c.b16 %v750, %v746
    %v951 = vpack.c.b16 %v751, %v747
    %v952 = vpack.c.b16 %v752, %v748
    %v953 = vpack.c.b16 %v757, %v753
    %v954 = vpack.c.b16 %v758, %v754
    %v955 = vpack.c.b16 %v759, %v755
    %v956 = vpack.c.b16 %v760, %v756
    %v957 = vpack.c.b16 %v765, %v761
    %v958 = vpack.c.b16 %v766, %v762
    %v959 = vpack.c.b16 %v767, %v763
    %v960 = vpack.c.b16 %v768, %v764
    %v961 = vpack.c.b16 %v773, %v769
    %v962 = vpack.c.b16 %v774, %v770
    %v963 = vpack.c.b16 %v775, %v771
    %v964 = vpack.c.b16 %v776, %v772
    %v965 = vpack.c.b16 %v781, %v777
    %v966 = vpack.c.b16 %v782, %v778
    %v967 = vpack.c.b16 %v783, %v779
    %v968 = vpack.c.b16 %v784, %v780
    %v969 = vpack.c.b16 %v789, %v785
    %v970 = vpack.c.b16 %v790, %v786
    %v971 = vpack.c.b16 %v791, %v787
    %v972 = vpack.c.b16 %v792, %v788
    %v973 = vpack.c.b16 %v797, %v793
    %v974 = vpack.c.b16 %v798, %v794
    %v975 = vpack.c.b16 %v799, %v795
    %v976 = vpack.c.b16 %v800, %v796
    %v977 = vpack.c.b16 %v805, %v801
    %v978 = vpack.c.b16 %v806, %v802
    %v979 = vpack.c.b16 %v807, %v803
    %v980 = vpack.c.b16 %v808, %v804
    %v981 = vpack.c.b16 %v813, %v809
    %v982 = vpack.c.b16 %v814, %v810
    %v983 = vpack.c.b16 %v815, %v811
    %v984 = vpack.c.b16 %v816, %v812
    %v985 = vpack.c.b16 %v821, %v817
    %v986 = vpack.c.b16 %v822, %v818
    %v987 = vpack.c.b16 %v823, %v819
    %v988 = vpack.c.b16 %v824, %v820
    %v989 = vpack.c.b16 %v829, %v825
    %v990 = vpack.c.b16 %v830, %v826
    %v991 = vpack.c.b16 %v831, %v827
    %v992 = vpack.c.b16 %v832, %v828
    %v993 = vpack.c.b16 %v837, %v833
    %v994 = vpack.c.b16 %v838, %v834
    %v995 = vpack.c.b16 %v839, %v835
    %v996 = vpack.c.b16 %v840, %v836
    %v997 = vpack.c.b16 %v845, %v841
    %v998 = vpack.c.b16 %v846, %v842
    %v999 = vpack.c.b16 %v847, %v843
    %v1000 = vpack.c.b16 %v848, %v844
    %v1001 = vpack.c.b16 %v853, %v849
    %v1002 = vpack.c.b16 %v854, %v850
    %v1003 = vpack.c.b16 %v855, %v851
    %v1004 = vpack.c.b16 %v856, %v852
    %v1005 = vpack.c.b16 %v861, %v857
    %v1006 = vpack.c.b16 %v862, %v858
    %v1007 = vpack.c.b16 %v863, %v859
    %v1008 = vpack.c.b16 %v864, %v860
    %v1009 = vpack.c.b16 %v869, %v865
    %v1010 = vpack.c.b16 %v870, %v866
    %v1011 = vpack.c.b16 %v871, %v867
    %v1012 = vpack.c.b16 %v872, %v868
    %v1013 = vpack.c.b16 %v877, %v873
    %v1014 = vpack.c.b16 %v878, %v874
    %v1015 = vpack.c.b16 %v879, %v875
    %v1016 = vpack.c.b16 %v880, %v876
    %v1017 = vpack.c.b16 %v885, %v881
    %v1018 = vpack.c.b16 %v886, %v882
    %v1019 = vpack.c.b16 %v887, %v883
    %v1020 = vpack.c.b16 %v888, %v884
    %v1021 = vpack.c.b16 %v893, %v889
    %v1022 = vpack.c.b16 %v894, %v890
    %v1023 = vpack.c.b16 %v895, %v891
    %v1024 = vpack.c.b16 %v896, %v892
    %1153 = vmatprep.subr.bf16.mxu0 %v926
    %1154 = vmatpush1.bf16.msra.mxu0 %v925
    %1155 = vmatprep.subr.bf16.mxu0 %v922
    %1156 = vmatpush1.bf16.msra.mxu0 %v921
    %1157 = vmatprep.subr.bf16.mxu0 %v918
    %1158 = vmatpush1.bf16.msra.mxu0 %v917
    %1159 = vmatprep.subr.bf16.mxu0 %v914
    %1160 = vmatpush1.bf16.msra.mxu0 %v913
    %1161 = vmatprep.subr.bf16.mxu0 %v910
    %1162 = vmatpush1.bf16.msra.mxu0 %v909
    %1163 = vmatprep.subr.bf16.mxu0 %v906
    %1164 = vmatpush1.bf16.msra.mxu0 %v905
    %1165 = vmatprep.subr.bf16.mxu0 %v902
    %1166 = vmatpush1.bf16.msra.mxu0 %v901
    %1167 = vmatprep.subr.bf16.mxu0 %v898
    %1168 = vmatpush1.bf16.msra.mxu0 %v897
    %1169 = vmatprep.subr.bf16.mxu0 %v958
    %1170 = vmatpush2.bf16.msra.mxu0 %v957
    %1171 = vmatprep.subr.bf16.mxu0 %v954
    %1172 = vmatpush2.bf16.msra.mxu0 %v953
    %1173 = vmatprep.subr.bf16.mxu0 %v950
    %1174 = vmatpush2.bf16.msra.mxu0 %v949
    %1175 = vmatprep.subr.bf16.mxu0 %v946
    %1176 = vmatpush2.bf16.msra.mxu0 %v945
    %1177 = vmatprep.subr.bf16.mxu0 %v942
    %1178 = vmatpush2.bf16.msra.mxu0 %v941
    %1179 = vmatprep.subr.bf16.mxu0 %v938
    %1180 = vmatpush2.bf16.msra.mxu0 %v937
    %1181 = vmatprep.subr.bf16.mxu0 %v934
    %1182 = vmatpush2.bf16.msra.mxu0 %v933
    %1183 = vmatprep.subr.bf16.mxu0 %v930
    %1184 = vmatpush2.bf16.msra.mxu0 %v929
    %1185 = vmatprep.mubr.bf16.mxu0 %v366
    %1186 = vmatmul.mubr.bf16.gmra.mxu0 %v365
    %v1187 = vpop.f32.mrf.mxu0
    %v1188 = vadd.f32 %v500, %v1187
    %v1189 = vpop.f32.mrf.mxu0
    %v1190 = vadd.f32 %v504, %v1189
    %v1191 = vpop.f32.mrf.mxu0
    %v1192 = vpop.f32.mrf.mxu0
    %1193 = vdwg.mxu0
    %1194 = vmatprep.subr.bf16.mxu0 %v990
    %1195 = vmatpush1.bf16.msra.mxu0 %v989
    %1196 = vmatprep.subr.bf16.mxu0 %v986
    %1197 = vmatpush1.bf16.msra.mxu0 %v985
    %1198 = vmatprep.subr.bf16.mxu0 %v982
    %1199 = vmatpush1.bf16.msra.mxu0 %v981
    %1200 = vmatprep.subr.bf16.mxu0 %v978
    %1201 = vmatpush1.bf16.msra.mxu0 %v977
    %1202 = vmatprep.subr.bf16.mxu0 %v974
    %1203 = vmatpush1.bf16.msra.mxu0 %v973
    %1204 = vmatprep.subr.bf16.mxu0 %v970
    %1205 = vmatpush1.bf16.msra.mxu0 %v969
    %1206 = vmatprep.subr.bf16.mxu0 %v966
    %1207 = vmatpush1.bf16.msra.mxu0 %v965
    %1208 = vmatprep.subr.bf16.mxu0 %v962
    %1209 = vmatpush1.bf16.msra.mxu0 %v961
    %1210 = vmatprep.subr.bf16.mxu0 %v1022
    %1211 = vmatpush2.bf16.msra.mxu0 %v1021
    %1212 = vmatprep.subr.bf16.mxu0 %v1018
    %1213 = vmatpush2.bf16.msra.mxu0 %v1017
    %1214 = vmatprep.subr.bf16.mxu0 %v1014
    %1215 = vmatpush2.bf16.msra.mxu0 %v1013
    %1216 = vmatprep.subr.bf16.mxu0 %v1010
    %1217 = vmatpush2.bf16.msra.mxu0 %v1009
    %1218 = vmatprep.subr.bf16.mxu0 %v1006
    %1219 = vmatpush2.bf16.msra.mxu0 %v1005
    %1220 = vmatprep.subr.bf16.mxu0 %v1002
    %1221 = vmatpush2.bf16.msra.mxu0 %v1001
    %1222 = vmatprep.subr.bf16.mxu0 %v998
    %1223 = vmatpush2.bf16.msra.mxu0 %v997
    %1224 = vmatprep.subr.bf16.mxu0 %v994
    %1225 = vmatpush2.bf16.msra.mxu0 %v993
    %1226 = vmatprep.mubr.bf16.mxu0 %v368
    %1227 = vmatmul.mubr.bf16.gmra.mxu0 %v367
    %v1228 = vpop.f32.mrf.mxu0
    %v1229 = vadd.f32 %v1188, %v1228
    %v1230 = vpop.f32.mrf.mxu0
    %v1231 = vadd.f32 %v1190, %v1230
    %v1232 = vpop.f32.mrf.mxu0
    %v1233 = vpop.f32.mrf.mxu0
    %1234 = vdwg.mxu0
    %1235 = vmatprep.subr.bf16.mxu0 %v928
    %1236 = vmatpush1.bf16.msra.mxu0 %v927
    %1237 = vmatprep.subr.bf16.mxu0 %v924
    %1238 = vmatpush1.bf16.msra.mxu0 %v923
    %1239 = vmatprep.subr.bf16.mxu0 %v920
    %1240 = vmatpush1.bf16.msra.mxu0 %v919
    %1241 = vmatprep.subr.bf16.mxu0 %v916
    %1242 = vmatpush1.bf16.msra.mxu0 %v915
    %1243 = vmatprep.subr.bf16.mxu0 %v912
    %1244 = vmatpush1.bf16.msra.mxu0 %v911
    %1245 = vmatprep.subr.bf16.mxu0 %v908
    %1246 = vmatpush1.bf16.msra.mxu0 %v907
    %1247 = vmatprep.subr.bf16.mxu0 %v904
    %1248 = vmatpush1.bf16.msra.mxu0 %v903
    %1249 = vmatprep.subr.bf16.mxu0 %v900
    %1250 = vmatpush1.bf16.msra.mxu0 %v899
    %1251 = vmatprep.subr.bf16.mxu0 %v960
    %1252 = vmatpush2.bf16.msra.mxu0 %v959
    %1253 = vmatprep.subr.bf16.mxu0 %v956
    %1254 = vmatpush2.bf16.msra.mxu0 %v955
    %1255 = vmatprep.subr.bf16.mxu0 %v952
    %1256 = vmatpush2.bf16.msra.mxu0 %v951
    %1257 = vmatprep.subr.bf16.mxu0 %v948
    %1258 = vmatpush2.bf16.msra.mxu0 %v947
    %1259 = vmatprep.subr.bf16.mxu0 %v944
    %1260 = vmatpush2.bf16.msra.mxu0 %v943
    %1261 = vmatprep.subr.bf16.mxu0 %v940
    %1262 = vmatpush2.bf16.msra.mxu0 %v939
    %1263 = vmatprep.subr.bf16.mxu0 %v936
    %1264 = vmatpush2.bf16.msra.mxu0 %v935
    %1265 = vmatprep.subr.bf16.mxu0 %v932
    %1266 = vmatpush2.bf16.msra.mxu0 %v931
    %1267 = vmatprep.mubr.bf16.mxu0 %v366
    %1268 = vmatmul.mubr.bf16.gmra.mxu0 %v365
    %v1269 = vpop.f32.mrf.mxu0
    %v1270 = vadd.f32 %v508, %v1269
    %v1271 = vpop.f32.mrf.mxu0
    %v1272 = vadd.f32 %v512, %v1271
    %v1273 = vpop.f32.mrf.mxu0
    %v1274 = vpop.f32.mrf.mxu0
    %1275 = vdwg.mxu0
    %1276 = vmatprep.subr.bf16.mxu0 %v992
    %1277 = vmatpush1.bf16.msra.mxu0 %v991
    %1278 = vmatprep.subr.bf16.mxu0 %v988
    %1279 = vmatpush1.bf16.msra.mxu0 %v987
    %1280 = vmatprep.subr.bf16.mxu0 %v984
    %1281 = vmatpush1.bf16.msra.mxu0 %v983
    %1282 = vmatprep.subr.bf16.mxu0 %v980
    %1283 = vmatpush1.bf16.msra.mxu0 %v979
    %1284 = vmatprep.subr.bf16.mxu0 %v976
    %1285 = vmatpush1.bf16.msra.mxu0 %v975
    %1286 = vmatprep.subr.bf16.mxu0 %v972
    %1287 = vmatpush1.bf16.msra.mxu0 %v971
    %1288 = vmatprep.subr.bf16.mxu0 %v968
    %1289 = vmatpush1.bf16.msra.mxu0 %v967
    %1290 = vmatprep.subr.bf16.mxu0 %v964
    %1291 = vmatpush1.bf16.msra.mxu0 %v963
    %1292 = vmatprep.subr.bf16.mxu0 %v1024
    %1293 = vmatpush2.bf16.msra.mxu0 %v1023
    %1294 = vmatprep.subr.bf16.mxu0 %v1020
    %1295 = vmatpush2.bf16.msra.mxu0 %v1019
    %1296 = vmatprep.subr.bf16.mxu0 %v1016
    %1297 = vmatpush2.bf16.msra.mxu0 %v1015
    %1298 = vmatprep.subr.bf16.mxu0 %v1012
    %1299 = vmatpush2.bf16.msra.mxu0 %v1011
    %1300 = vmatprep.subr.bf16.mxu0 %v1008
    %1301 = vmatpush2.bf16.msra.mxu0 %v1007
    %1302 = vmatprep.subr.bf16.mxu0 %v1004
    %1303 = vmatpush2.bf16.msra.mxu0 %v1003
    %1304 = vmatprep.subr.bf16.mxu0 %v1000
    %1305 = vmatpush2.bf16.msra.mxu0 %v999
    %1306 = vmatprep.subr.bf16.mxu0 %v996
    %1307 = vmatpush2.bf16.msra.mxu0 %v995
    %1308 = vmatprep.mubr.bf16.mxu0 %v368
    %1309 = vmatmul.mubr.bf16.gmra.mxu0 %v367
    %v1310 = vpop.f32.mrf.mxu0
    %v1311 = vadd.f32 %v1270, %v1310
    %v1312 = vpop.f32.mrf.mxu0
    %v1313 = vadd.f32 %v1272, %v1312
    %v1314 = vpop.f32.mrf.mxu0
    %v1315 = vpop.f32.mrf.mxu0
    %1316 = vdwg.mxu0
    %1318 = vset.pattern.permute.xlu0 0
    %1319 = vperm.xlu0 %1318, %v88
    %v1320 = vpop.permute.xlu0 %1319
    %v1322 = vlaneseq
    %v1323 = vshrl.u32 %v1322, 7
    %v1324 = vsub.s32 2, %v1323
    %v1325 = vrot.slane %v83, %v1324
    %v1326 = vlaneseq
    %v1327 = vshrl.u32 %v1326, 7
    %v1328 = vsub.s32 2, %v1327
    %v1329 = vrot.slane %v84, %v1328
    %v1330 = vlaneseq
    %v1331 = vshrl.u32 %v1330, 7
    %v1332 = vsub.s32 2, %v1331
    %v1333 = vrot.slane %v85, %v1332
    %v1334 = vlaneseq
    %v1335 = vshrl.u32 %v1334, 7
    %v1336 = vsub.s32 2, %v1335
    %v1337 = vrot.slane %v86, %v1336
    %v1338 = vmul.f32 %v1320, %v1325
    %v1339 = vmul.f32 %v1320, %v1329
    %v1340 = vmul.f32 %v1320, %v1333
    %v1341 = vmul.f32 %v1320, %v1337
    %v1342 = vadd.f32 %v1229, %v1338
    %v1343 = vadd.f32 %v1231, %v1339
    %v1344 = vadd.f32 %v1311, %v1340
    %v1345 = vadd.f32 %v1313, %v1341
    %1346 = vset.pattern.permute.xlu0 1
    %1347 = vperm.xlu0 %1346, %v88
    %v1348 = vpop.permute.xlu0 %1347
    %v1350 = vlaneseq
    %v1351 = vshrl.u32 %v1350, 7
    %v1352 = vsub.s32 3, %v1351
    %v1353 = vrot.slane %v83, %v1352
    %v1354 = vlaneseq
    %v1355 = vshrl.u32 %v1354, 7
    %v1356 = vsub.s32 3, %v1355
    %v1357 = vrot.slane %v84, %v1356
    %v1358 = vlaneseq
    %v1359 = vshrl.u32 %v1358, 7
    %v1360 = vsub.s32 3, %v1359
    %v1361 = vrot.slane %v85, %v1360
    %v1362 = vlaneseq
    %v1363 = vshrl.u32 %v1362, 7
    %v1364 = vsub.s32 3, %v1363
    %v1365 = vrot.slane %v86, %v1364
    %v1366 = vmul.f32 %v1348, %v1353
    %v1367 = vmul.f32 %v1348, %v1357
    %v1368 = vmul.f32 %v1348, %v1361
    %v1369 = vmul.f32 %v1348, %v1365
    %v1370 = vadd.f32 %v1342, %v1366
    %v1371 = vadd.f32 %v1343, %v1367
    %v1372 = vadd.f32 %v1344, %v1368
    %v1373 = vadd.f32 %v1345, %v1369
    %1374 = vset.pattern.permute.xlu0 2
    %1375 = vperm.xlu0 %1374, %v88
    %v1376 = vpop.permute.xlu0 %1375
    %v1378 = vlaneseq
    %v1379 = vshrl.u32 %v1378, 7
    %v1380 = vsub.s32 4, %v1379
    %v1381 = vrot.slane %v83, %v1380
    %v1382 = vlaneseq
    %v1383 = vshrl.u32 %v1382, 7
    %v1384 = vsub.s32 4, %v1383
    %v1385 = vrot.slane %v84, %v1384
    %v1386 = vlaneseq
    %v1387 = vshrl.u32 %v1386, 7
    %v1388 = vsub.s32 4, %v1387
    %v1389 = vrot.slane %v85, %v1388
    %v1390 = vlaneseq
    %v1391 = vshrl.u32 %v1390, 7
    %v1392 = vsub.s32 4, %v1391
    %v1393 = vrot.slane %v86, %v1392
    %v1394 = vmul.f32 %v1376, %v1381
    %v1395 = vmul.f32 %v1376, %v1385
    %v1396 = vmul.f32 %v1376, %v1389
    %v1397 = vmul.f32 %v1376, %v1393
    %v1398 = vadd.f32 %v1370, %v1394
    %v1399 = vadd.f32 %v1371, %v1395
    %v1400 = vadd.f32 %v1372, %v1396
    %v1401 = vadd.f32 %v1373, %v1397
    %1402 = vset.pattern.permute.xlu0 3
    %1403 = vperm.xlu0 %1402, %v88
    %v1404 = vpop.permute.xlu0 %1403
    %v1406 = vlaneseq
    %v1407 = vshrl.u32 %v1406, 7
    %v1408 = vsub.s32 5, %v1407
    %v1409 = vrot.slane %v83, %v1408
    %v1410 = vlaneseq
    %v1411 = vshrl.u32 %v1410, 7
    %v1412 = vsub.s32 5, %v1411
    %v1413 = vrot.slane %v84, %v1412
    %v1414 = vlaneseq
    %v1415 = vshrl.u32 %v1414, 7
    %v1416 = vsub.s32 5, %v1415
    %v1417 = vrot.slane %v85, %v1416
    %v1418 = vlaneseq
    %v1419 = vshrl.u32 %v1418, 7
    %v1420 = vsub.s32 5, %v1419
    %v1421 = vrot.slane %v86, %v1420
    %v1422 = vmul.f32 %v1404, %v1409
    %v1423 = vmul.f32 %v1404, %v1413
    %v1424 = vmul.f32 %v1404, %v1417
    %v1425 = vmul.f32 %v1404, %v1421
    %v1426 = vadd.f32 %v1398, %v1422
    %v1427 = vadd.f32 %v1399, %v1423
    %v1428 = vadd.f32 %v1400, %v1424
    %v1429 = vadd.f32 %v1401, %v1425
    %v1430 = vrot.slane %v1426, 4
    %v1431 = vadd.f32 %v1426, %v1430
    %v1432 = vrot.slane %v1431, 2
    %v1433 = vadd.f32 %v1431, %v1432
    %v1434 = vrot.slane %v1433, 1
    %v1435 = vadd.f32 %v1433, %v1434
    %v1436 = vrot.slane %v1427, 4
    %v1437 = vadd.f32 %v1427, %v1436
    %v1438 = vrot.slane %v1437, 2
    %v1439 = vadd.f32 %v1437, %v1438
    %v1440 = vrot.slane %v1439, 1
    %v1441 = vadd.f32 %v1439, %v1440
    %v1442 = vrot.slane %v1428, 4
    %v1443 = vadd.f32 %v1428, %v1442
    %v1444 = vrot.slane %v1443, 2
    %v1445 = vadd.f32 %v1443, %v1444
    %v1446 = vrot.slane %v1445, 1
    %v1447 = vadd.f32 %v1445, %v1446
    %v1448 = vrot.slane %v1429, 4
    %v1449 = vadd.f32 %v1429, %v1448
    %v1450 = vrot.slane %v1449, 2
    %v1451 = vadd.f32 %v1449, %v1450
    %v1452 = vrot.slane %v1451, 1
    %v1453 = vadd.f32 %v1451, %v1452
    %v1454 = vmul.f32 %v1435, %v240
    %v1455 = vmul.f32 %v1441, %v240
    %v1456 = vmul.f32 %v1447, %v240
    %v1457 = vmul.f32 %v1453, %v240
    %v1458 = vmul.f32 %v1426, %v1426
    %v1459 = vmul.f32 %v1427, %v1427
    %v1460 = vmul.f32 %v1428, %v1428
    %v1461 = vmul.f32 %v1429, %v1429
    %v1462 = vrot.slane %v1458, 4
    %v1463 = vadd.f32 %v1458, %v1462
    %v1464 = vrot.slane %v1463, 2
    %v1465 = vadd.f32 %v1463, %v1464
    %v1466 = vrot.slane %v1465, 1
    %v1467 = vadd.f32 %v1465, %v1466
    %v1468 = vrot.slane %v1459, 4
    %v1469 = vadd.f32 %v1459, %v1468
    %v1470 = vrot.slane %v1469, 2
    %v1471 = vadd.f32 %v1469, %v1470
    %v1472 = vrot.slane %v1471, 1
    %v1473 = vadd.f32 %v1471, %v1472
    %v1474 = vrot.slane %v1460, 4
    %v1475 = vadd.f32 %v1460, %v1474
    %v1476 = vrot.slane %v1475, 2
    %v1477 = vadd.f32 %v1475, %v1476
    %v1478 = vrot.slane %v1477, 1
    %v1479 = vadd.f32 %v1477, %v1478
    %v1480 = vrot.slane %v1461, 4
    %v1481 = vadd.f32 %v1461, %v1480
    %v1482 = vrot.slane %v1481, 2
    %v1483 = vadd.f32 %v1481, %v1482
    %v1484 = vrot.slane %v1483, 1
    %v1485 = vadd.f32 %v1483, %v1484
    %v1486 = vmul.f32 %v1467, %v240
    %v1487 = vmul.f32 %v1473, %v240
    %v1488 = vmul.f32 %v1479, %v240
    %v1489 = vmul.f32 %v1485, %v240
    %v1490 = vmul.f32 %v1454, %v1454
    %v1491 = vmul.f32 %v1455, %v1455
    %v1492 = vmul.f32 %v1456, %v1456
    %v1493 = vmul.f32 %v1457, %v1457
    %v1494 = vsub.f32 %v1486, %v1490
    %v1495 = vsub.f32 %v1487, %v1491
    %v1496 = vsub.f32 %v1488, %v1492
    %v1497 = vsub.f32 %v1489, %v1493
    %v1498 = vmax.f32 %v1494, 0.0
    %v1499 = vmax.f32 %v1495, 0.0
    %v1500 = vmax.f32 %v1496, 0.0
    %v1501 = vmax.f32 %v1497, 0.0
    %v1502 = vadd.f32 %v1498, 1e-05
    %v1503 = vadd.f32 %v1499, 1e-05
    %v1504 = vadd.f32 %v1500, 1e-05
    %v1505 = vadd.f32 %v1501, 1e-05
    %v1506 = vrsqrt.pop %v1502
    %v1507 = vrsqrt.pop %v1503
    %v1508 = vrsqrt.pop %v1504
    %v1509 = vrsqrt.pop %v1505
    %v1510 = vmul.f32 %v79, %v1506
    %v1511 = vmul.f32 %v80, %v1507
    %v1512 = vmul.f32 %v81, %v1508
    %v1513 = vmul.f32 %v82, %v1509
    %v1514 = vmul.f32 %v1454, %v1510
    %v1515 = vmul.f32 %v1455, %v1511
    %v1516 = vmul.f32 %v1456, %v1512
    %v1517 = vmul.f32 %v1457, %v1513
    %v1522 = vrot.slane %v1514, 7
    %v1523 = vrot.slane %v1515, 7
    %v1524 = vrot.slane %v1516, 7
    %v1525 = vrot.slane %v1517, 7
    %v1530 = vsub.f32 %v79, %v1522
    %v1531 = vsub.f32 %v80, %v1523
    %v1532 = vsub.f32 %v81, %v1524
    %v1533 = vsub.f32 %v82, %v1525
    %v1534 = vlaneseq
    %v1535 = vshrl.u32 %v1534, 7
    %v1536 = vsub.s32 4, %v1535
    %v1537 = vrot.slane %v1510, %v1536
    %v1538 = vlaneseq
    %v1539 = vshrl.u32 %v1538, 7
    %v1540 = vsub.s32 4, %v1539
    %v1541 = vrot.slane %v1511, %v1540
    %v1542 = vlaneseq
    %v1543 = vshrl.u32 %v1542, 7
    %v1544 = vsub.s32 4, %v1543
    %v1545 = vrot.slane %v1512, %v1544
    %v1546 = vlaneseq
    %v1547 = vshrl.u32 %v1546, 7
    %v1548 = vsub.s32 4, %v1547
    %v1549 = vrot.slane %v1513, %v1548
    %v1550 = vmul.f32 %v1426, %v1537
    %v1551 = vmul.f32 %v1427, %v1541
    %v1552 = vmul.f32 %v1428, %v1545
    %v1553 = vmul.f32 %v1429, %v1549
    %v1554 = vlaneseq
    %v1555 = vshrl.u32 %v1554, 7
    %v1556 = vsub.s32 5, %v1555
    %v1557 = vrot.slane %v1530, %v1556
    %v1558 = vlaneseq
    %v1559 = vshrl.u32 %v1558, 7
    %v1560 = vsub.s32 5, %v1559
    %v1561 = vrot.slane %v1531, %v1560
    %v1562 = vlaneseq
    %v1563 = vshrl.u32 %v1562, 7
    %v1564 = vsub.s32 5, %v1563
    %v1565 = vrot.slane %v1532, %v1564
    %v1566 = vlaneseq
    %v1567 = vshrl.u32 %v1566, 7
    %v1568 = vsub.s32 5, %v1567
    %v1569 = vrot.slane %v1533, %v1568
    %v1570 = vadd.f32 %v1550, %v1557
    %v1571 = vadd.f32 %v1551, %v1561
    %v1572 = vadd.f32 %v1552, %v1565
    %v1573 = vadd.f32 %v1553, %v1569
    %v1574 = vmax.f32 %v1570, 0.0
    %v1575 = vmax.f32 %v1571, 0.0
    %v1576 = vmax.f32 %v1572, 0.0
    %v1577 = vmax.f32 %v1573, 0.0
    %v1578 = vpack.c.bf16 %v1574, %v1574
    %v1579 = vpack.c.bf16 %v1575, %v1575
    %v1580 = vpack.c.bf16 %v1576, %v1576
    %v1581 = vpack.c.bf16 %v1577, %v1577
    %v1582 = vld [vmem:[#allocation6] sm:$0xff]
    %v1583 = vld [vmem:[#allocation6 + $0x8] sm:$0xff]
    %v1584 = vld [vmem:[#allocation6 + $0x10] sm:$0xff]
    %v1585 = vld [vmem:[#allocation6 + $0x18] sm:$0xff]
    %v1586 = vld [vmem:[#allocation6 + $0x20] sm:$0xff]
    %v1587 = vld [vmem:[#allocation6 + $0x28] sm:$0xff]
    %v1588 = vld [vmem:[#allocation6 + $0x30] sm:$0xff]
    %v1589 = vld [vmem:[#allocation6 + $0x38] sm:$0xff]
    %v1590 = vld [vmem:[#allocation6 + $0x40] sm:$0xff]
    %v1591 = vld [vmem:[#allocation6 + $0x48] sm:$0xff]
    %v1592 = vld [vmem:[#allocation6 + $0x50] sm:$0xff]
    %v1593 = vld [vmem:[#allocation6 + $0x58] sm:$0xff]
    %v1594 = vld [vmem:[#allocation6 + $0x60] sm:$0xff]
    %v1595 = vld [vmem:[#allocation6 + $0x68] sm:$0xff]
    %v1596 = vld [vmem:[#allocation6 + $0x70] sm:$0xff]
    %v1597 = vld [vmem:[#allocation6 + $0x78] sm:$0xff]
    %v1598 = vld [vmem:[#allocation6 + $0x80] sm:$0xff]
    %v1599 = vld [vmem:[#allocation6 + $0x88] sm:$0xff]
    %v1600 = vld [vmem:[#allocation6 + $0x90] sm:$0xff]
    %v1601 = vld [vmem:[#allocation6 + $0x98] sm:$0xff]
    %v1602 = vld [vmem:[#allocation6 + $0xa0] sm:$0xff]
    %v1603 = vld [vmem:[#allocation6 + $0xa8] sm:$0xff]
    %v1604 = vld [vmem:[#allocation6 + $0xb0] sm:$0xff]
    %v1605 = vld [vmem:[#allocation6 + $0xb8] sm:$0xff]
    %v1606 = vld [vmem:[#allocation6 + $0xc0] sm:$0xff]
    %v1607 = vld [vmem:[#allocation6 + $0xc8] sm:$0xff]
    %v1608 = vld [vmem:[#allocation6 + $0xd0] sm:$0xff]
    %v1609 = vld [vmem:[#allocation6 + $0xd8] sm:$0xff]
    %v1610 = vld [vmem:[#allocation6 + $0xe0] sm:$0xff]
    %v1611 = vld [vmem:[#allocation6 + $0xe8] sm:$0xff]
    %v1612 = vld [vmem:[#allocation6 + $0xf0] sm:$0xff]
    %v1613 = vld [vmem:[#allocation6 + $0xf8] sm:$0xff]
    %v1614 = vld [vmem:[#allocation6 + $0x100] sm:$0xff]
    %v1615 = vld [vmem:[#allocation6 + $0x108] sm:$0xff]
    %v1616 = vld [vmem:[#allocation6 + $0x110] sm:$0xff]
    %v1617 = vld [vmem:[#allocation6 + $0x118] sm:$0xff]
    %v1618 = vld [vmem:[#allocation6 + $0x120] sm:$0xff]
    %v1619 = vld [vmem:[#allocation6 + $0x128] sm:$0xff]
    %v1620 = vld [vmem:[#allocation6 + $0x130] sm:$0xff]
    %v1621 = vld [vmem:[#allocation6 + $0x138] sm:$0xff]
    %v1622 = vld [vmem:[#allocation6 + $0x140] sm:$0xff]
    %v1623 = vld [vmem:[#allocation6 + $0x148] sm:$0xff]
    %v1624 = vld [vmem:[#allocation6 + $0x150] sm:$0xff]
    %v1625 = vld [vmem:[#allocation6 + $0x158] sm:$0xff]
    %v1626 = vld [vmem:[#allocation6 + $0x160] sm:$0xff]
    %v1627 = vld [vmem:[#allocation6 + $0x168] sm:$0xff]
    %v1628 = vld [vmem:[#allocation6 + $0x170] sm:$0xff]
    %v1629 = vld [vmem:[#allocation6 + $0x178] sm:$0xff]
    %v1630 = vld [vmem:[#allocation6 + $0x180] sm:$0xff]
    %v1631 = vld [vmem:[#allocation6 + $0x188] sm:$0xff]
    %v1632 = vld [vmem:[#allocation6 + $0x190] sm:$0xff]
    %v1633 = vld [vmem:[#allocation6 + $0x198] sm:$0xff]
    %v1634 = vld [vmem:[#allocation6 + $0x1a0] sm:$0xff]
    %v1635 = vld [vmem:[#allocation6 + $0x1a8] sm:$0xff]
    %v1636 = vld [vmem:[#allocation6 + $0x1b0] sm:$0xff]
    %v1637 = vld [vmem:[#allocation6 + $0x1b8] sm:$0xff]
    %v1638 = vld [vmem:[#allocation6 + $0x1c0] sm:$0xff]
    %v1639 = vld [vmem:[#allocation6 + $0x1c8] sm:$0xff]
    %v1640 = vld [vmem:[#allocation6 + $0x1d0] sm:$0xff]
    %v1641 = vld [vmem:[#allocation6 + $0x1d8] sm:$0xff]
    %v1642 = vld [vmem:[#allocation6 + $0x1e0] sm:$0xff]
    %v1643 = vld [vmem:[#allocation6 + $0x1e8] sm:$0xff]
    %v1644 = vld [vmem:[#allocation6 + $0x1f0] sm:$0xff]
    %v1645 = vld [vmem:[#allocation6 + $0x1f8] sm:$0xff]
    %v1646 = vld [vmem:[#allocation6 + $0x200] sm:$0xff]
    %v1647 = vld [vmem:[#allocation6 + $0x208] sm:$0xff]
    %v1648 = vld [vmem:[#allocation6 + $0x210] sm:$0xff]
    %v1649 = vld [vmem:[#allocation6 + $0x218] sm:$0xff]
    %v1650 = vld [vmem:[#allocation6 + $0x220] sm:$0xff]
    %v1651 = vld [vmem:[#allocation6 + $0x228] sm:$0xff]
    %v1652 = vld [vmem:[#allocation6 + $0x230] sm:$0xff]
    %v1653 = vld [vmem:[#allocation6 + $0x238] sm:$0xff]
    %v1654 = vld [vmem:[#allocation6 + $0x240] sm:$0xff]
    %v1655 = vld [vmem:[#allocation6 + $0x248] sm:$0xff]
    %v1656 = vld [vmem:[#allocation6 + $0x250] sm:$0xff]
    %v1657 = vld [vmem:[#allocation6 + $0x258] sm:$0xff]
    %v1658 = vld [vmem:[#allocation6 + $0x260] sm:$0xff]
    %v1659 = vld [vmem:[#allocation6 + $0x268] sm:$0xff]
    %v1660 = vld [vmem:[#allocation6 + $0x270] sm:$0xff]
    %v1661 = vld [vmem:[#allocation6 + $0x278] sm:$0xff]
    %v1662 = vld [vmem:[#allocation6 + $0x280] sm:$0xff]
    %v1663 = vld [vmem:[#allocation6 + $0x288] sm:$0xff]
    %v1664 = vld [vmem:[#allocation6 + $0x290] sm:$0xff]
    %v1665 = vld [vmem:[#allocation6 + $0x298] sm:$0xff]
    %v1666 = vld [vmem:[#allocation6 + $0x2a0] sm:$0xff]
    %v1667 = vld [vmem:[#allocation6 + $0x2a8] sm:$0xff]
    %v1668 = vld [vmem:[#allocation6 + $0x2b0] sm:$0xff]
    %v1669 = vld [vmem:[#allocation6 + $0x2b8] sm:$0xff]
    %v1670 = vld [vmem:[#allocation6 + $0x2c0] sm:$0xff]
    %v1671 = vld [vmem:[#allocation6 + $0x2c8] sm:$0xff]
    %v1672 = vld [vmem:[#allocation6 + $0x2d0] sm:$0xff]
    %v1673 = vld [vmem:[#allocation6 + $0x2d8] sm:$0xff]
    %v1674 = vld [vmem:[#allocation6 + $0x2e0] sm:$0xff]
    %v1675 = vld [vmem:[#allocation6 + $0x2e8] sm:$0xff]
    %v1676 = vld [vmem:[#allocation6 + $0x2f0] sm:$0xff]
    %v1677 = vld [vmem:[#allocation6 + $0x2f8] sm:$0xff]
    %v1678 = vld [vmem:[#allocation6 + $0x300] sm:$0xff]
    %v1679 = vld [vmem:[#allocation6 + $0x308] sm:$0xff]
    %v1680 = vld [vmem:[#allocation6 + $0x310] sm:$0xff]
    %v1681 = vld [vmem:[#allocation6 + $0x318] sm:$0xff]
    %v1682 = vld [vmem:[#allocation6 + $0x320] sm:$0xff]
    %v1683 = vld [vmem:[#allocation6 + $0x328] sm:$0xff]
    %v1684 = vld [vmem:[#allocation6 + $0x330] sm:$0xff]
    %v1685 = vld [vmem:[#allocation6 + $0x338] sm:$0xff]
    %v1686 = vld [vmem:[#allocation6 + $0x340] sm:$0xff]
    %v1687 = vld [vmem:[#allocation6 + $0x348] sm:$0xff]
    %v1688 = vld [vmem:[#allocation6 + $0x350] sm:$0xff]
    %v1689 = vld [vmem:[#allocation6 + $0x358] sm:$0xff]
    %v1690 = vld [vmem:[#allocation6 + $0x360] sm:$0xff]
    %v1691 = vld [vmem:[#allocation6 + $0x368] sm:$0xff]
    %v1692 = vld [vmem:[#allocation6 + $0x370] sm:$0xff]
    %v1693 = vld [vmem:[#allocation6 + $0x378] sm:$0xff]
    %v1694 = vld [vmem:[#allocation6 + $0x380] sm:$0xff]
    %v1695 = vld [vmem:[#allocation6 + $0x388] sm:$0xff]
    %v1696 = vld [vmem:[#allocation6 + $0x390] sm:$0xff]
    %v1697 = vld [vmem:[#allocation6 + $0x398] sm:$0xff]
    %v1698 = vld [vmem:[#allocation6 + $0x3a0] sm:$0xff]
    %v1699 = vld [vmem:[#allocation6 + $0x3a8] sm:$0xff]
    %v1700 = vld [vmem:[#allocation6 + $0x3b0] sm:$0xff]
    %v1701 = vld [vmem:[#allocation6 + $0x3b8] sm:$0xff]
    %v1702 = vld [vmem:[#allocation6 + $0x3c0] sm:$0xff]
    %v1703 = vld [vmem:[#allocation6 + $0x3c8] sm:$0xff]
    %v1704 = vld [vmem:[#allocation6 + $0x3d0] sm:$0xff]
    %v1705 = vld [vmem:[#allocation6 + $0x3d8] sm:$0xff]
    %v1706 = vld [vmem:[#allocation6 + $0x3e0] sm:$0xff]
    %v1707 = vld [vmem:[#allocation6 + $0x3e8] sm:$0xff]
    %v1708 = vld [vmem:[#allocation6 + $0x3f0] sm:$0xff]
    %v1709 = vld [vmem:[#allocation6 + $0x3f8] sm:$0xff]
    %v1710 = vlaneseq
    %v1711 = vshrl.u32 %v1710, 7
    %v1712 = vsub.s32 6, %v1711
    %v1713 = vrot.slane %v79, %v1712
    %v1714 = vlaneseq
    %v1715 = vshrl.u32 %v1714, 7
    %v1716 = vsub.s32 6, %v1715
    %v1717 = vrot.slane %v80, %v1716
    %v1718 = vlaneseq
    %v1719 = vshrl.u32 %v1718, 7
    %v1720 = vsub.s32 6, %v1719
    %v1721 = vrot.slane %v81, %v1720
    %v1722 = vlaneseq
    %v1723 = vshrl.u32 %v1722, 7
    %v1724 = vsub.s32 6, %v1723
    %v1725 = vrot.slane %v82, %v1724
    %v1854 = vunpack.c.l.b16 %v1582
    %v1855 = vunpack.c.h.b16 %v1582
    %v1856 = vunpack.c.l.b16 %v1583
    %v1857 = vunpack.c.h.b16 %v1583
    %v1858 = vunpack.c.l.b16 %v1584
    %v1859 = vunpack.c.h.b16 %v1584
    %v1860 = vunpack.c.l.b16 %v1585
    %v1861 = vunpack.c.h.b16 %v1585
    %v1862 = vunpack.c.l.b16 %v1586
    %v1863 = vunpack.c.h.b16 %v1586
    %v1864 = vunpack.c.l.b16 %v1587
    %v1865 = vunpack.c.h.b16 %v1587
    %v1866 = vunpack.c.l.b16 %v1588
    %v1867 = vunpack.c.h.b16 %v1588
    %v1868 = vunpack.c.l.b16 %v1589
    %v1869 = vunpack.c.h.b16 %v1589
    %v1870 = vunpack.c.l.b16 %v1590
    %v1871 = vunpack.c.h.b16 %v1590
    %v1872 = vunpack.c.l.b16 %v1591
    %v1873 = vunpack.c.h.b16 %v1591
    %v1874 = vunpack.c.l.b16 %v1592
    %v1875 = vunpack.c.h.b16 %v1592
    %v1876 = vunpack.c.l.b16 %v1593
    %v1877 = vunpack.c.h.b16 %v1593
    %v1878 = vunpack.c.l.b16 %v1594
    %v1879 = vunpack.c.h.b16 %v1594
    %v1880 = vunpack.c.l.b16 %v1595
    %v1881 = vunpack.c.h.b16 %v1595
    %v1882 = vunpack.c.l.b16 %v1596
    %v1883 = vunpack.c.h.b16 %v1596
    %v1884 = vunpack.c.l.b16 %v1597
    %v1885 = vunpack.c.h.b16 %v1597
    %v1886 = vunpack.c.l.b16 %v1598
    %v1887 = vunpack.c.h.b16 %v1598
    %v1888 = vunpack.c.l.b16 %v1599
    %v1889 = vunpack.c.h.b16 %v1599
    %v1890 = vunpack.c.l.b16 %v1600
    %v1891 = vunpack.c.h.b16 %v1600
    %v1892 = vunpack.c.l.b16 %v1601
    %v1893 = vunpack.c.h.b16 %v1601
    %v1894 = vunpack.c.l.b16 %v1602
    %v1895 = vunpack.c.h.b16 %v1602
    %v1896 = vunpack.c.l.b16 %v1603
    %v1897 = vunpack.c.h.b16 %v1603
    %v1898 = vunpack.c.l.b16 %v1604
    %v1899 = vunpack.c.h.b16 %v1604
    %v1900 = vunpack.c.l.b16 %v1605
    %v1901 = vunpack.c.h.b16 %v1605
    %v1902 = vunpack.c.l.b16 %v1606
    %v1903 = vunpack.c.h.b16 %v1606
    %v1904 = vunpack.c.l.b16 %v1607
    %v1905 = vunpack.c.h.b16 %v1607
    %v1906 = vunpack.c.l.b16 %v1608
    %v1907 = vunpack.c.h.b16 %v1608
    %v1908 = vunpack.c.l.b16 %v1609
    %v1909 = vunpack.c.h.b16 %v1609
    %v1910 = vunpack.c.l.b16 %v1610
    %v1911 = vunpack.c.h.b16 %v1610
    %v1912 = vunpack.c.l.b16 %v1611
    %v1913 = vunpack.c.h.b16 %v1611
    %v1914 = vunpack.c.l.b16 %v1612
    %v1915 = vunpack.c.h.b16 %v1612
    %v1916 = vunpack.c.l.b16 %v1613
    %v1917 = vunpack.c.h.b16 %v1613
    %v1918 = vunpack.c.l.b16 %v1614
    %v1919 = vunpack.c.h.b16 %v1614
    %v1920 = vunpack.c.l.b16 %v1615
    %v1921 = vunpack.c.h.b16 %v1615
    %v1922 = vunpack.c.l.b16 %v1616
    %v1923 = vunpack.c.h.b16 %v1616
    %v1924 = vunpack.c.l.b16 %v1617
    %v1925 = vunpack.c.h.b16 %v1617
    %v1926 = vunpack.c.l.b16 %v1618
    %v1927 = vunpack.c.h.b16 %v1618
    %v1928 = vunpack.c.l.b16 %v1619
    %v1929 = vunpack.c.h.b16 %v1619
    %v1930 = vunpack.c.l.b16 %v1620
    %v1931 = vunpack.c.h.b16 %v1620
    %v1932 = vunpack.c.l.b16 %v1621
    %v1933 = vunpack.c.h.b16 %v1621
    %v1934 = vunpack.c.l.b16 %v1622
    %v1935 = vunpack.c.h.b16 %v1622
    %v1936 = vunpack.c.l.b16 %v1623
    %v1937 = vunpack.c.h.b16 %v1623
    %v1938 = vunpack.c.l.b16 %v1624
    %v1939 = vunpack.c.h.b16 %v1624
    %v1940 = vunpack.c.l.b16 %v1625
    %v1941 = vunpack.c.h.b16 %v1625
    %v1942 = vunpack.c.l.b16 %v1626
    %v1943 = vunpack.c.h.b16 %v1626
    %v1944 = vunpack.c.l.b16 %v1627
    %v1945 = vunpack.c.h.b16 %v1627
    %v1946 = vunpack.c.l.b16 %v1628
    %v1947 = vunpack.c.h.b16 %v1628
    %v1948 = vunpack.c.l.b16 %v1629
    %v1949 = vunpack.c.h.b16 %v1629
    %v1950 = vunpack.c.l.b16 %v1630
    %v1951 = vunpack.c.h.b16 %v1630
    %v1952 = vunpack.c.l.b16 %v1631
    %v1953 = vunpack.c.h.b16 %v1631
    %v1954 = vunpack.c.l.b16 %v1632
    %v1955 = vunpack.c.h.b16 %v1632
    %v1956 = vunpack.c.l.b16 %v1633
    %v1957 = vunpack.c.h.b16 %v1633
    %v1958 = vunpack.c.l.b16 %v1634
    %v1959 = vunpack.c.h.b16 %v1634
    %v1960 = vunpack.c.l.b16 %v1635
    %v1961 = vunpack.c.h.b16 %v1635
    %v1962 = vunpack.c.l.b16 %v1636
    %v1963 = vunpack.c.h.b16 %v1636
    %v1964 = vunpack.c.l.b16 %v1637
    %v1965 = vunpack.c.h.b16 %v1637
    %v1966 = vunpack.c.l.b16 %v1638
    %v1967 = vunpack.c.h.b16 %v1638
    %v1968 = vunpack.c.l.b16 %v1639
    %v1969 = vunpack.c.h.b16 %v1639
    %v1970 = vunpack.c.l.b16 %v1640
    %v1971 = vunpack.c.h.b16 %v1640
    %v1972 = vunpack.c.l.b16 %v1641
    %v1973 = vunpack.c.h.b16 %v1641
    %v1974 = vunpack.c.l.b16 %v1642
    %v1975 = vunpack.c.h.b16 %v1642
    %v1976 = vunpack.c.l.b16 %v1643
    %v1977 = vunpack.c.h.b16 %v1643
    %v1978 = vunpack.c.l.b16 %v1644
    %v1979 = vunpack.c.h.b16 %v1644
    %v1980 = vunpack.c.l.b16 %v1645
    %v1981 = vunpack.c.h.b16 %v1645
    %v1982 = vunpack.c.l.b16 %v1646
    %v1983 = vunpack.c.h.b16 %v1646
    %v1984 = vunpack.c.l.b16 %v1647
    %v1985 = vunpack.c.h.b16 %v1647
    %v1986 = vunpack.c.l.b16 %v1648
    %v1987 = vunpack.c.h.b16 %v1648
    %v1988 = vunpack.c.l.b16 %v1649
    %v1989 = vunpack.c.h.b16 %v1649
    %v1990 = vunpack.c.l.b16 %v1650
    %v1991 = vunpack.c.h.b16 %v1650
    %v1992 = vunpack.c.l.b16 %v1651
    %v1993 = vunpack.c.h.b16 %v1651
    %v1994 = vunpack.c.l.b16 %v1652
    %v1995 = vunpack.c.h.b16 %v1652
    %v1996 = vunpack.c.l.b16 %v1653
    %v1997 = vunpack.c.h.b16 %v1653
    %v1998 = vunpack.c.l.b16 %v1654
    %v1999 = vunpack.c.h.b16 %v1654
    %v2000 = vunpack.c.l.b16 %v1655
    %v2001 = vunpack.c.h.b16 %v1655
    %v2002 = vunpack.c.l.b16 %v1656
    %v2003 = vunpack.c.h.b16 %v1656
    %v2004 = vunpack.c.l.b16 %v1657
    %v2005 = vunpack.c.h.b16 %v1657
    %v2006 = vunpack.c.l.b16 %v1658
    %v2007 = vunpack.c.h.b16 %v1658
    %v2008 = vunpack.c.l.b16 %v1659
    %v2009 = vunpack.c.h.b16 %v1659
    %v2010 = vunpack.c.l.b16 %v1660
    %v2011 = vunpack.c.h.b16 %v1660
    %v2012 = vunpack.c.l.b16 %v1661
    %v2013 = vunpack.c.h.b16 %v1661
    %v2014 = vunpack.c.l.b16 %v1662
    %v2015 = vunpack.c.h.b16 %v1662
    %v2016 = vunpack.c.l.b16 %v1663
    %v2017 = vunpack.c.h.b16 %v1663
    %v2018 = vunpack.c.l.b16 %v1664
    %v2019 = vunpack.c.h.b16 %v1664
    %v2020 = vunpack.c.l.b16 %v1665
    %v2021 = vunpack.c.h.b16 %v1665
    %v2022 = vunpack.c.l.b16 %v1666
    %v2023 = vunpack.c.h.b16 %v1666
    %v2024 = vunpack.c.l.b16 %v1667
    %v2025 = vunpack.c.h.b16 %v1667
    %v2026 = vunpack.c.l.b16 %v1668
    %v2027 = vunpack.c.h.b16 %v1668
    %v2028 = vunpack.c.l.b16 %v1669
    %v2029 = vunpack.c.h.b16 %v1669
    %v2030 = vunpack.c.l.b16 %v1670
    %v2031 = vunpack.c.h.b16 %v1670
    %v2032 = vunpack.c.l.b16 %v1671
    %v2033 = vunpack.c.h.b16 %v1671
    %v2034 = vunpack.c.l.b16 %v1672
    %v2035 = vunpack.c.h.b16 %v1672
    %v2036 = vunpack.c.l.b16 %v1673
    %v2037 = vunpack.c.h.b16 %v1673
    %v2038 = vunpack.c.l.b16 %v1674
    %v2039 = vunpack.c.h.b16 %v1674
    %v2040 = vunpack.c.l.b16 %v1675
    %v2041 = vunpack.c.h.b16 %v1675
    %v2042 = vunpack.c.l.b16 %v1676
    %v2043 = vunpack.c.h.b16 %v1676
    %v2044 = vunpack.c.l.b16 %v1677
    %v2045 = vunpack.c.h.b16 %v1677
    %v2046 = vunpack.c.l.b16 %v1678
    %v2047 = vunpack.c.h.b16 %v1678
    %v2048 = vunpack.c.l.b16 %v1679
    %v2049 = vunpack.c.h.b16 %v1679
    %v2050 = vunpack.c.l.b16 %v1680
    %v2051 = vunpack.c.h.b16 %v1680
    %v2052 = vunpack.c.l.b16 %v1681
    %v2053 = vunpack.c.h.b16 %v1681
    %v2054 = vunpack.c.l.b16 %v1682
    %v2055 = vunpack.c.h.b16 %v1682
    %v2056 = vunpack.c.l.b16 %v1683
    %v2057 = vunpack.c.h.b16 %v1683
    %v2058 = vunpack.c.l.b16 %v1684
    %v2059 = vunpack.c.h.b16 %v1684
    %v2060 = vunpack.c.l.b16 %v1685
    %v2061 = vunpack.c.h.b16 %v1685
    %v2062 = vunpack.c.l.b16 %v1686
    %v2063 = vunpack.c.h.b16 %v1686
    %v2064 = vunpack.c.l.b16 %v1687
    %v2065 = vunpack.c.h.b16 %v1687
    %v2066 = vunpack.c.l.b16 %v1688
    %v2067 = vunpack.c.h.b16 %v1688
    %v2068 = vunpack.c.l.b16 %v1689
    %v2069 = vunpack.c.h.b16 %v1689
    %v2070 = vunpack.c.l.b16 %v1690
    %v2071 = vunpack.c.h.b16 %v1690
    %v2072 = vunpack.c.l.b16 %v1691
    %v2073 = vunpack.c.h.b16 %v1691
    %v2074 = vunpack.c.l.b16 %v1692
    %v2075 = vunpack.c.h.b16 %v1692
    %v2076 = vunpack.c.l.b16 %v1693
    %v2077 = vunpack.c.h.b16 %v1693
    %v2078 = vunpack.c.l.b16 %v1694
    %v2079 = vunpack.c.h.b16 %v1694
    %v2080 = vunpack.c.l.b16 %v1695
    %v2081 = vunpack.c.h.b16 %v1695
    %v2082 = vunpack.c.l.b16 %v1696
    %v2083 = vunpack.c.h.b16 %v1696
    %v2084 = vunpack.c.l.b16 %v1697
    %v2085 = vunpack.c.h.b16 %v1697
    %v2086 = vunpack.c.l.b16 %v1698
    %v2087 = vunpack.c.h.b16 %v1698
    %v2088 = vunpack.c.l.b16 %v1699
    %v2089 = vunpack.c.h.b16 %v1699
    %v2090 = vunpack.c.l.b16 %v1700
    %v2091 = vunpack.c.h.b16 %v1700
    %v2092 = vunpack.c.l.b16 %v1701
    %v2093 = vunpack.c.h.b16 %v1701
    %v2094 = vunpack.c.l.b16 %v1702
    %v2095 = vunpack.c.h.b16 %v1702
    %v2096 = vunpack.c.l.b16 %v1703
    %v2097 = vunpack.c.h.b16 %v1703
    %v2098 = vunpack.c.l.b16 %v1704
    %v2099 = vunpack.c.h.b16 %v1704
    %v2100 = vunpack.c.l.b16 %v1705
    %v2101 = vunpack.c.h.b16 %v1705
    %v2102 = vunpack.c.l.b16 %v1706
    %v2103 = vunpack.c.h.b16 %v1706
    %v2104 = vunpack.c.l.b16 %v1707
    %v2105 = vunpack.c.h.b16 %v1707
    %v2106 = vunpack.c.l.b16 %v1708
    %v2107 = vunpack.c.h.b16 %v1708
    %v2108 = vunpack.c.l.b16 %v1709
    %v2109 = vunpack.c.h.b16 %v1709
    %v2110 = vpack.c.b16 %v1858, %v1854
    %v2111 = vpack.c.b16 %v1859, %v1855
    %v2112 = vpack.c.b16 %v1860, %v1856
    %v2113 = vpack.c.b16 %v1861, %v1857
    %v2114 = vpack.c.b16 %v1866, %v1862
    %v2115 = vpack.c.b16 %v1867, %v1863
    %v2116 = vpack.c.b16 %v1868, %v1864
    %v2117 = vpack.c.b16 %v1869, %v1865
    %v2118 = vpack.c.b16 %v1874, %v1870
    %v2119 = vpack.c.b16 %v1875, %v1871
    %v2120 = vpack.c.b16 %v1876, %v1872
    %v2121 = vpack.c.b16 %v1877, %v1873
    %v2122 = vpack.c.b16 %v1882, %v1878
    %v2123 = vpack.c.b16 %v1883, %v1879
    %v2124 = vpack.c.b16 %v1884, %v1880
    %v2125 = vpack.c.b16 %v1885, %v1881
    %v2126 = vpack.c.b16 %v1890, %v1886
    %v2127 = vpack.c.b16 %v1891, %v1887
    %v2128 = vpack.c.b16 %v1892, %v1888
    %v2129 = vpack.c.b16 %v1893, %v1889
    %v2130 = vpack.c.b16 %v1898, %v1894
    %v2131 = vpack.c.b16 %v1899, %v1895
    %v2132 = vpack.c.b16 %v1900, %v1896
    %v2133 = vpack.c.b16 %v1901, %v1897
    %v2134 = vpack.c.b16 %v1906, %v1902
    %v2135 = vpack.c.b16 %v1907, %v1903
    %v2136 = vpack.c.b16 %v1908, %v1904
    %v2137 = vpack.c.b16 %v1909, %v1905
    %v2138 = vpack.c.b16 %v1914, %v1910
    %v2139 = vpack.c.b16 %v1915, %v1911
    %v2140 = vpack.c.b16 %v1916, %v1912
    %v2141 = vpack.c.b16 %v1917, %v1913
    %v2142 = vpack.c.b16 %v1922, %v1918
    %v2143 = vpack.c.b16 %v1923, %v1919
    %v2144 = vpack.c.b16 %v1924, %v1920
    %v2145 = vpack.c.b16 %v1925, %v1921
    %v2146 = vpack.c.b16 %v1930, %v1926
    %v2147 = vpack.c.b16 %v1931, %v1927
    %v2148 = vpack.c.b16 %v1932, %v1928
    %v2149 = vpack.c.b16 %v1933, %v1929
    %v2150 = vpack.c.b16 %v1938, %v1934
    %v2151 = vpack.c.b16 %v1939, %v1935
    %v2152 = vpack.c.b16 %v1940, %v1936
    %v2153 = vpack.c.b16 %v1941, %v1937
    %v2154 = vpack.c.b16 %v1946, %v1942
    %v2155 = vpack.c.b16 %v1947, %v1943
    %v2156 = vpack.c.b16 %v1948, %v1944
    %v2157 = vpack.c.b16 %v1949, %v1945
    %v2158 = vpack.c.b16 %v1954, %v1950
    %v2159 = vpack.c.b16 %v1955, %v1951
    %v2160 = vpack.c.b16 %v1956, %v1952
    %v2161 = vpack.c.b16 %v1957, %v1953
    %v2162 = vpack.c.b16 %v1962, %v1958
    %v2163 = vpack.c.b16 %v1963, %v1959
    %v2164 = vpack.c.b16 %v1964, %v1960
    %v2165 = vpack.c.b16 %v1965, %v1961
    %v2166 = vpack.c.b16 %v1970, %v1966
    %v2167 = vpack.c.b16 %v1971, %v1967
    %v2168 = vpack.c.b16 %v1972, %v1968
    %v2169 = vpack.c.b16 %v1973, %v1969
    %v2170 = vpack.c.b16 %v1978, %v1974
    %v2171 = vpack.c.b16 %v1979, %v1975
    %v2172 = vpack.c.b16 %v1980, %v1976
    %v2173 = vpack.c.b16 %v1981, %v1977
    %v2174 = vpack.c.b16 %v1986, %v1982
    %v2175 = vpack.c.b16 %v1987, %v1983
    %v2176 = vpack.c.b16 %v1988, %v1984
    %v2177 = vpack.c.b16 %v1989, %v1985
    %v2178 = vpack.c.b16 %v1994, %v1990
    %v2179 = vpack.c.b16 %v1995, %v1991
    %v2180 = vpack.c.b16 %v1996, %v1992
    %v2181 = vpack.c.b16 %v1997, %v1993
    %v2182 = vpack.c.b16 %v2002, %v1998
    %v2183 = vpack.c.b16 %v2003, %v1999
    %v2184 = vpack.c.b16 %v2004, %v2000
    %v2185 = vpack.c.b16 %v2005, %v2001
    %v2186 = vpack.c.b16 %v2010, %v2006
    %v2187 = vpack.c.b16 %v2011, %v2007
    %v2188 = vpack.c.b16 %v2012, %v2008
    %v2189 = vpack.c.b16 %v2013, %v2009
    %v2190 = vpack.c.b16 %v2018, %v2014
    %v2191 = vpack.c.b16 %v2019, %v2015
    %v2192 = vpack.c.b16 %v2020, %v2016
    %v2193 = vpack.c.b16 %v2021, %v2017
    %v2194 = vpack.c.b16 %v2026, %v2022
    %v2195 = vpack.c.b16 %v2027, %v2023
    %v2196 = vpack.c.b16 %v2028, %v2024
    %v2197 = vpack.c.b16 %v2029, %v2025
    %v2198 = vpack.c.b16 %v2034, %v2030
    %v2199 = vpack.c.b16 %v2035, %v2031
    %v2200 = vpack.c.b16 %v2036, %v2032
    %v2201 = vpack.c.b16 %v2037, %v2033
    %v2202 = vpack.c.b16 %v2042, %v2038
    %v2203 = vpack.c.b16 %v2043, %v2039
    %v2204 = vpack.c.b16 %v2044, %v2040
    %v2205 = vpack.c.b16 %v2045, %v2041
    %v2206 = vpack.c.b16 %v2050, %v2046
    %v2207 = vpack.c.b16 %v2051, %v2047
    %v2208 = vpack.c.b16 %v2052, %v2048
    %v2209 = vpack.c.b16 %v2053, %v2049
    %v2210 = vpack.c.b16 %v2058, %v2054
    %v2211 = vpack.c.b16 %v2059, %v2055
    %v2212 = vpack.c.b16 %v2060, %v2056
    %v2213 = vpack.c.b16 %v2061, %v2057
    %v2214 = vpack.c.b16 %v2066, %v2062
    %v2215 = vpack.c.b16 %v2067, %v2063
    %v2216 = vpack.c.b16 %v2068, %v2064
    %v2217 = vpack.c.b16 %v2069, %v2065
    %v2218 = vpack.c.b16 %v2074, %v2070
    %v2219 = vpack.c.b16 %v2075, %v2071
    %v2220 = vpack.c.b16 %v2076, %v2072
    %v2221 = vpack.c.b16 %v2077, %v2073
    %v2222 = vpack.c.b16 %v2082, %v2078
    %v2223 = vpack.c.b16 %v2083, %v2079
    %v2224 = vpack.c.b16 %v2084, %v2080
    %v2225 = vpack.c.b16 %v2085, %v2081
    %v2226 = vpack.c.b16 %v2090, %v2086
    %v2227 = vpack.c.b16 %v2091, %v2087
    %v2228 = vpack.c.b16 %v2092, %v2088
    %v2229 = vpack.c.b16 %v2093, %v2089
    %v2230 = vpack.c.b16 %v2098, %v2094
    %v2231 = vpack.c.b16 %v2099, %v2095
    %v2232 = vpack.c.b16 %v2100, %v2096
    %v2233 = vpack.c.b16 %v2101, %v2097
    %v2234 = vpack.c.b16 %v2106, %v2102
    %v2235 = vpack.c.b16 %v2107, %v2103
    %v2236 = vpack.c.b16 %v2108, %v2104
    %v2237 = vpack.c.b16 %v2109, %v2105
    %2366 = vmatprep.subr.bf16.mxu0 %v2139
    %2367 = vmatpush1.bf16.msra.mxu0 %v2138
    %2368 = vmatprep.subr.bf16.mxu0 %v2135
    %2369 = vmatpush1.bf16.msra.mxu0 %v2134
    %2370 = vmatprep.subr.bf16.mxu0 %v2131
    %2371 = vmatpush1.bf16.msra.mxu0 %v2130
    %2372 = vmatprep.subr.bf16.mxu0 %v2127
    %2373 = vmatpush1.bf16.msra.mxu0 %v2126
    %2374 = vmatprep.subr.bf16.mxu0 %v2123
    %2375 = vmatpush1.bf16.msra.mxu0 %v2122
    %2376 = vmatprep.subr.bf16.mxu0 %v2119
    %2377 = vmatpush1.bf16.msra.mxu0 %v2118
    %2378 = vmatprep.subr.bf16.mxu0 %v2115
    %2379 = vmatpush1.bf16.msra.mxu0 %v2114
    %2380 = vmatprep.subr.bf16.mxu0 %v2111
    %2381 = vmatpush1.bf16.msra.mxu0 %v2110
    %2382 = vmatprep.subr.bf16.mxu0 %v2171
    %2383 = vmatpush2.bf16.msra.mxu0 %v2170
    %2384 = vmatprep.subr.bf16.mxu0 %v2167
    %2385 = vmatpush2.bf16.msra.mxu0 %v2166
    %2386 = vmatprep.subr.bf16.mxu0 %v2163
    %2387 = vmatpush2.bf16.msra.mxu0 %v2162
    %2388 = vmatprep.subr.bf16.mxu0 %v2159
    %2389 = vmatpush2.bf16.msra.mxu0 %v2158
    %2390 = vmatprep.subr.bf16.mxu0 %v2155
    %2391 = vmatpush2.bf16.msra.mxu0 %v2154
    %2392 = vmatprep.subr.bf16.mxu0 %v2151
    %2393 = vmatpush2.bf16.msra.mxu0 %v2150
    %2394 = vmatprep.subr.bf16.mxu0 %v2147
    %2395 = vmatpush2.bf16.msra.mxu0 %v2146
    %2396 = vmatprep.subr.bf16.mxu0 %v2143
    %2397 = vmatpush2.bf16.msra.mxu0 %v2142
    %2398 = vmatprep.mubr.bf16.mxu0 %v1579
    %2399 = vmatmul.mubr.bf16.gmra.mxu0 %v1578
    %v2400 = vpop.f32.mrf.mxu0
    %v2401 = vadd.f32 %v1713, %v2400
    %v2402 = vpop.f32.mrf.mxu0
    %v2403 = vadd.f32 %v1717, %v2402
    %v2404 = vpop.f32.mrf.mxu0
    %v2405 = vpop.f32.mrf.mxu0
    %2406 = vdwg.mxu0
    %2407 = vmatprep.subr.bf16.mxu0 %v2203
    %2408 = vmatpush1.bf16.msra.mxu0 %v2202
    %2409 = vmatprep.subr.bf16.mxu0 %v2199
    %2410 = vmatpush1.bf16.msra.mxu0 %v2198
    %2411 = vmatprep.subr.bf16.mxu0 %v2195
    %2412 = vmatpush1.bf16.msra.mxu0 %v2194
    %2413 = vmatprep.subr.bf16.mxu0 %v2191
    %2414 = vmatpush1.bf16.msra.mxu0 %v2190
    %2415 = vmatprep.subr.bf16.mxu0 %v2187
    %2416 = vmatpush1.bf16.msra.mxu0 %v2186
    %2417 = vmatprep.subr.bf16.mxu0 %v2183
    %2418 = vmatpush1.bf16.msra.mxu0 %v2182
    %2419 = vmatprep.subr.bf16.mxu0 %v2179
    %2420 = vmatpush1.bf16.msra.mxu0 %v2178
    %2421 = vmatprep.subr.bf16.mxu0 %v2175
    %2422 = vmatpush1.bf16.msra.mxu0 %v2174
    %2423 = vmatprep.subr.bf16.mxu0 %v2235
    %2424 = vmatpush2.bf16.msra.mxu0 %v2234
    %2425 = vmatprep.subr.bf16.mxu0 %v2231
    %2426 = vmatpush2.bf16.msra.mxu0 %v2230
    %2427 = vmatprep.subr.bf16.mxu0 %v2227
    %2428 = vmatpush2.bf16.msra.mxu0 %v2226
    %2429 = vmatprep.subr.bf16.mxu0 %v2223
    %2430 = vmatpush2.bf16.msra.mxu0 %v2222
    %2431 = vmatprep.subr.bf16.mxu0 %v2219
    %2432 = vmatpush2.bf16.msra.mxu0 %v2218
    %2433 = vmatprep.subr.bf16.mxu0 %v2215
    %2434 = vmatpush2.bf16.msra.mxu0 %v2214
    %2435 = vmatprep.subr.bf16.mxu0 %v2211
    %2436 = vmatpush2.bf16.msra.mxu0 %v2210
    %2437 = vmatprep.subr.bf16.mxu0 %v2207
    %2438 = vmatpush2.bf16.msra.mxu0 %v2206
    %2439 = vmatprep.mubr.bf16.mxu0 %v1581
    %2440 = vmatmul.mubr.bf16.gmra.mxu0 %v1580
    %v2441 = vpop.f32.mrf.mxu0
    %v2442 = vadd.f32 %v2401, %v2441
    %v2443 = vpop.f32.mrf.mxu0
    %v2444 = vadd.f32 %v2403, %v2443
    %v2445 = vpop.f32.mrf.mxu0
    %v2446 = vpop.f32.mrf.mxu0
    %2447 = vdwg.mxu0
    %2448 = vmatprep.subr.bf16.mxu0 %v2141
    %2449 = vmatpush1.bf16.msra.mxu0 %v2140
    %2450 = vmatprep.subr.bf16.mxu0 %v2137
    %2451 = vmatpush1.bf16.msra.mxu0 %v2136
    %2452 = vmatprep.subr.bf16.mxu0 %v2133
    %2453 = vmatpush1.bf16.msra.mxu0 %v2132
    %2454 = vmatprep.subr.bf16.mxu0 %v2129
    %2455 = vmatpush1.bf16.msra.mxu0 %v2128
    %2456 = vmatprep.subr.bf16.mxu0 %v2125
    %2457 = vmatpush1.bf16.msra.mxu0 %v2124
    %2458 = vmatprep.subr.bf16.mxu0 %v2121
    %2459 = vmatpush1.bf16.msra.mxu0 %v2120
    %2460 = vmatprep.subr.bf16.mxu0 %v2117
    %2461 = vmatpush1.bf16.msra.mxu0 %v2116
    %2462 = vmatprep.subr.bf16.mxu0 %v2113
    %2463 = vmatpush1.bf16.msra.mxu0 %v2112
    %2464 = vmatprep.subr.bf16.mxu0 %v2173
    %2465 = vmatpush2.bf16.msra.mxu0 %v2172
    %2466 = vmatprep.subr.bf16.mxu0 %v2169
    %2467 = vmatpush2.bf16.msra.mxu0 %v2168
    %2468 = vmatprep.subr.bf16.mxu0 %v2165
    %2469 = vmatpush2.bf16.msra.mxu0 %v2164
    %2470 = vmatprep.subr.bf16.mxu0 %v2161
    %2471 = vmatpush2.bf16.msra.mxu0 %v2160
    %2472 = vmatprep.subr.bf16.mxu0 %v2157
    %2473 = vmatpush2.bf16.msra.mxu0 %v2156
    %2474 = vmatprep.subr.bf16.mxu0 %v2153
    %2475 = vmatpush2.bf16.msra.mxu0 %v2152
    %2476 = vmatprep.subr.bf16.mxu0 %v2149
    %2477 = vmatpush2.bf16.msra.mxu0 %v2148
    %2478 = vmatprep.subr.bf16.mxu0 %v2145
    %2479 = vmatpush2.bf16.msra.mxu0 %v2144
    %2480 = vmatprep.mubr.bf16.mxu0 %v1579
    %2481 = vmatmul.mubr.bf16.gmra.mxu0 %v1578
    %v2482 = vpop.f32.mrf.mxu0
    %v2483 = vadd.f32 %v1721, %v2482
    %v2484 = vpop.f32.mrf.mxu0
    %v2485 = vadd.f32 %v1725, %v2484
    %v2486 = vpop.f32.mrf.mxu0
    %v2487 = vpop.f32.mrf.mxu0
    %2488 = vdwg.mxu0
    %2489 = vmatprep.subr.bf16.mxu0 %v2205
    %2490 = vmatpush1.bf16.msra.mxu0 %v2204
    %2491 = vmatprep.subr.bf16.mxu0 %v2201
    %2492 = vmatpush1.bf16.msra.mxu0 %v2200
    %2493 = vmatprep.subr.bf16.mxu0 %v2197
    %2494 = vmatpush1.bf16.msra.mxu0 %v2196
    %2495 = vmatprep.subr.bf16.mxu0 %v2193
    %2496 = vmatpush1.bf16.msra.mxu0 %v2192
    %2497 = vmatprep.subr.bf16.mxu0 %v2189
    %2498 = vmatpush1.bf16.msra.mxu0 %v2188
    %2499 = vmatprep.subr.bf16.mxu0 %v2185
    %2500 = vmatpush1.bf16.msra.mxu0 %v2184
    %2501 = vmatprep.subr.bf16.mxu0 %v2181
    %2502 = vmatpush1.bf16.msra.mxu0 %v2180
    %2503 = vmatprep.subr.bf16.mxu0 %v2177
    %2504 = vmatpush1.bf16.msra.mxu0 %v2176
    %2505 = vmatprep.subr.bf16.mxu0 %v2237
    %2506 = vmatpush2.bf16.msra.mxu0 %v2236
    %2507 = vmatprep.subr.bf16.mxu0 %v2233
    %2508 = vmatpush2.bf16.msra.mxu0 %v2232
    %2509 = vmatprep.subr.bf16.mxu0 %v2229
    %2510 = vmatpush2.bf16.msra.mxu0 %v2228
    %2511 = vmatprep.subr.bf16.mxu0 %v2225
    %2512 = vmatpush2.bf16.msra.mxu0 %v2224
    %2513 = vmatprep.subr.bf16.mxu0 %v2221
    %2514 = vmatpush2.bf16.msra.mxu0 %v2220
    %2515 = vmatprep.subr.bf16.mxu0 %v2217
    %2516 = vmatpush2.bf16.msra.mxu0 %v2216
    %2517 = vmatprep.subr.bf16.mxu0 %v2213
    %2518 = vmatpush2.bf16.msra.mxu0 %v2212
    %2519 = vmatprep.subr.bf16.mxu0 %v2209
    %2520 = vmatpush2.bf16.msra.mxu0 %v2208
    %2521 = vmatprep.mubr.bf16.mxu0 %v1581
    %2522 = vmatmul.mubr.bf16.gmra.mxu0 %v1580
    %v2523 = vpop.f32.mrf.mxu0
    %v2524 = vadd.f32 %v2483, %v2523
    %v2525 = vpop.f32.mrf.mxu0
    %v2526 = vadd.f32 %v2485, %v2525
    %v2527 = vpop.f32.mrf.mxu0
    %v2528 = vpop.f32.mrf.mxu0
    %2529 = vdwg.mxu0
    %v2530 = vrot.slane %v2442, 4
    %v2531 = vadd.f32 %v2442, %v2530
    %v2532 = vrot.slane %v2531, 2
    %v2533 = vadd.f32 %v2531, %v2532
    %v2534 = vrot.slane %v2533, 1
    %v2535 = vadd.f32 %v2533, %v2534
    %v2536 = vrot.slane %v2444, 4
    %v2537 = vadd.f32 %v2444, %v2536
    %v2538 = vrot.slane %v2537, 2
    %v2539 = vadd.f32 %v2537, %v2538
    %v2540 = vrot.slane %v2539, 1
    %v2541 = vadd.f32 %v2539, %v2540
    %v2542 = vrot.slane %v2524, 4
    %v2543 = vadd.f32 %v2524, %v2542
    %v2544 = vrot.slane %v2543, 2
    %v2545 = vadd.f32 %v2543, %v2544
    %v2546 = vrot.slane %v2545, 1
    %v2547 = vadd.f32 %v2545, %v2546
    %v2548 = vrot.slane %v2526, 4
    %v2549 = vadd.f32 %v2526, %v2548
    %v2550 = vrot.slane %v2549, 2
    %v2551 = vadd.f32 %v2549, %v2550
    %v2552 = vrot.slane %v2551, 1
    %v2553 = vadd.f32 %v2551, %v2552
    %v2554 = vmul.f32 %v2535, %v240
    %v2555 = vmul.f32 %v2541, %v240
    %v2556 = vmul.f32 %v2547, %v240
    %v2557 = vmul.f32 %v2553, %v240
    %v2558 = vmul.f32 %v2442, %v2442
    %v2559 = vmul.f32 %v2444, %v2444
    %v2560 = vmul.f32 %v2524, %v2524
    %v2561 = vmul.f32 %v2526, %v2526
    %v2562 = vrot.slane %v2558, 4
    %v2563 = vadd.f32 %v2558, %v2562
    %v2564 = vrot.slane %v2563, 2
    %v2565 = vadd.f32 %v2563, %v2564
    %v2566 = vrot.slane %v2565, 1
    %v2567 = vadd.f32 %v2565, %v2566
    %v2568 = vrot.slane %v2559, 4
    %v2569 = vadd.f32 %v2559, %v2568
    %v2570 = vrot.slane %v2569, 2
    %v2571 = vadd.f32 %v2569, %v2570
    %v2572 = vrot.slane %v2571, 1
    %v2573 = vadd.f32 %v2571, %v2572
    %v2574 = vrot.slane %v2560, 4
    %v2575 = vadd.f32 %v2560, %v2574
    %v2576 = vrot.slane %v2575, 2
    %v2577 = vadd.f32 %v2575, %v2576
    %v2578 = vrot.slane %v2577, 1
    %v2579 = vadd.f32 %v2577, %v2578
    %v2580 = vrot.slane %v2561, 4
    %v2581 = vadd.f32 %v2561, %v2580
    %v2582 = vrot.slane %v2581, 2
    %v2583 = vadd.f32 %v2581, %v2582
    %v2584 = vrot.slane %v2583, 1
    %v2585 = vadd.f32 %v2583, %v2584
    %v2586 = vmul.f32 %v2567, %v240
    %v2587 = vmul.f32 %v2573, %v240
    %v2588 = vmul.f32 %v2579, %v240
    %v2589 = vmul.f32 %v2585, %v240
    %v2590 = vmul.f32 %v2554, %v2554
    %v2591 = vmul.f32 %v2555, %v2555
    %v2592 = vmul.f32 %v2556, %v2556
    %v2593 = vmul.f32 %v2557, %v2557
    %v2594 = vsub.f32 %v2586, %v2590
    %v2595 = vsub.f32 %v2587, %v2591
    %v2596 = vsub.f32 %v2588, %v2592
    %v2597 = vsub.f32 %v2589, %v2593
    %v2598 = vmax.f32 %v2594, 0.0
    %v2599 = vmax.f32 %v2595, 0.0
    %v2600 = vmax.f32 %v2596, 0.0
    %v2601 = vmax.f32 %v2597, 0.0
    %v2602 = vadd.f32 %v2598, 1e-05
    %v2603 = vadd.f32 %v2599, 1e-05
    %v2604 = vadd.f32 %v2600, 1e-05
    %v2605 = vadd.f32 %v2601, 1e-05
    %v2606 = vrsqrt.pop %v2602
    %v2607 = vrsqrt.pop %v2603
    %v2608 = vrsqrt.pop %v2604
    %v2609 = vrsqrt.pop %v2605
    %v2610 = vmul.f32 %v79, %v2606
    %v2611 = vmul.f32 %v80, %v2607
    %v2612 = vmul.f32 %v81, %v2608
    %v2613 = vmul.f32 %v82, %v2609
    %v2614 = vmul.f32 %v2554, %v2610
    %v2615 = vmul.f32 %v2555, %v2611
    %v2616 = vmul.f32 %v2556, %v2612
    %v2617 = vmul.f32 %v2557, %v2613
    %v2622 = vrot.slane %v2614, 7
    %v2623 = vrot.slane %v2615, 7
    %v2624 = vrot.slane %v2616, 7
    %v2625 = vrot.slane %v2617, 7
    %v2630 = vsub.f32 %v83, %v2622
    %v2631 = vsub.f32 %v84, %v2623
    %v2632 = vsub.f32 %v85, %v2624
    %v2633 = vsub.f32 %v86, %v2625
    %v2634 = vlaneseq
    %v2635 = vshrl.u32 %v2634, 7
    %v2636 = vsub.s32 7, %v2635
    %v2637 = vrot.slane %v2610, %v2636
    %v2638 = vlaneseq
    %v2639 = vshrl.u32 %v2638, 7
    %v2640 = vsub.s32 7, %v2639
    %v2641 = vrot.slane %v2611, %v2640
    %v2642 = vlaneseq
    %v2643 = vshrl.u32 %v2642, 7
    %v2644 = vsub.s32 7, %v2643
    %v2645 = vrot.slane %v2612, %v2644
    %v2646 = vlaneseq
    %v2647 = vshrl.u32 %v2646, 7
    %v2648 = vsub.s32 7, %v2647
    %v2649 = vrot.slane %v2613, %v2648
    %v2650 = vmul.f32 %v2442, %v2637
    %v2651 = vmul.f32 %v2444, %v2641
    %v2652 = vmul.f32 %v2524, %v2645
    %v2653 = vmul.f32 %v2526, %v2649
    %v2654 = vlaneseq
    %v2655 = vshrl.u32 %v2654, 7
    %v2656 = vsub.s32 0, %v2655
    %v2657 = vrot.slane %v2630, %v2656
    %v2658 = vlaneseq
    %v2659 = vshrl.u32 %v2658, 7
    %v2660 = vsub.s32 0, %v2659
    %v2661 = vrot.slane %v2631, %v2660
    %v2662 = vlaneseq
    %v2663 = vshrl.u32 %v2662, 7
    %v2664 = vsub.s32 0, %v2663
    %v2665 = vrot.slane %v2632, %v2664
    %v2666 = vlaneseq
    %v2667 = vshrl.u32 %v2666, 7
    %v2668 = vsub.s32 0, %v2667
    %v2669 = vrot.slane %v2633, %v2668
    %v2670 = vadd.f32 %v2650, %v2657
    %v2671 = vadd.f32 %v2651, %v2661
    %v2672 = vadd.f32 %v2652, %v2665
    %v2673 = vadd.f32 %v2653, %v2669
    %v2674 = vmax.f32 %v2670, 0.0
    %v2675 = vmax.f32 %v2671, 0.0
    %v2676 = vmax.f32 %v2672, 0.0
    %v2677 = vmax.f32 %v2673, 0.0
    %v2678 = vlaneseq
    %v2679 = vshrl.u32 %v2678, 7
    %v2680 = vsub.s32 1, %v2679
    %v2681 = vrot.slane %v83, %v2680
    %v2682 = vlaneseq
    %v2683 = vshrl.u32 %v2682, 7
    %v2684 = vsub.s32 1, %v2683
    %v2685 = vrot.slane %v84, %v2684
    %v2686 = vlaneseq
    %v2687 = vshrl.u32 %v2686, 7
    %v2688 = vsub.s32 1, %v2687
    %v2689 = vrot.slane %v85, %v2688
    %v2690 = vlaneseq
    %v2691 = vshrl.u32 %v2690, 7
    %v2692 = vsub.s32 1, %v2691
    %v2693 = vrot.slane %v86, %v2692
    %v2694 = vmul.f32 %v2674, %v2681
    %v2695 = vmul.f32 %v2675, %v2685
    %v2696 = vmul.f32 %v2676, %v2689
    %v2697 = vmul.f32 %v2677, %v2693
    %v2698 = vadd.f32 %v2694, %v2695
    %v2699 = vadd.f32 %v2698, %v2696
    %v2700 = vadd.f32 %v2699, %v2697
    %2701 = vadd.xlane.f32.xlu0 %v2700
    %v2702 = vpop.xlane.xlu0 %2701
    %v2703 = vlaneseq
    %v2704 = vshrl.u32 %v2703, 7
    %v2705 = vsub.s32 6, %v2704
    %v2706 = vrot.slane %v83, %v2705
    %v2707 = vadd.f32 %v2702, %v2706
    %vm2708 = vcmask 7168
    %2709 = vst.msk [vmem:[%s6] sm:$0xff] %vm2708, %v2707
    // Predicated region
    $region42: #{tpu_custom_call.1} parent=1 // pred_check
      _
    $region43: #{tpu_custom_call.1} parent=1 // pred_check_branch
      %2711 = sbr.rel (0) target = $region45
    $region44: #{tpu_custom_call.1} parent=1 // pred_region
      _
    $region45: #{tpu_custom_call.1} parent=1 // pred_fallthru
      _
    // Predicated region
    $region46: #{tpu_custom_call.1} parent=1 // pred_check
      _
    $region47: #{tpu_custom_call.1} parent=1 // pred_check_branch
      %2713 = sbr.rel (0) target = $region49
    $region48: #{tpu_custom_call.1} parent=1 // pred_region
      _
    $region49: #{tpu_custom_call.1} parent=1 // pred_fallthru
      _
    %2714 = vsyncpa [#allocation3], 1
    %2715 = vsyncpa [#allocation5], 1
    %2716 = vsyncpa [#allocation8], 1

</llo_original>
